<compile_context>
chip_gen: v6e
topology: v6e:2x2x1
jax: 0.10.0
libtpu: 0.0.40
codegen_flags: <defaults>
</compile_context>

<pallas_src>
import functools
import math

import jax
import jax.numpy as jnp
from jax.experimental import pallas as pl
from jax.experimental.pallas import tpu as pltpu

LN_EPS = 1e-5                      # nn.LayerNorm default
TWO_PI = 2.0 * math.pi
_DEFAULT_TILE_N = 512              # rows per grid step (multiple of 8)
_VMEM_LIMIT_BYTES = 32 * 1024 * 1024


def _round_up(x, m):
    return ((x + m - 1) // m) * m


def _choose_tile(n, tile_n):
    if tile_n is not None:
        return max(8, _round_up(int(tile_n), 8))
    # aim for >= 2 grid steps (v7x has 2 TensorCores fed by grid sharding),
    # cap so double-buffered tiles + f32 intermediates stay small in VMEM.
    return min(_DEFAULT_TILE_N, max(8, _round_up((n + 1) // 2, 8)))


def _layernorm(h, gamma, beta):
    mean = jnp.mean(h, axis=-1, keepdims=True)
    centered = h - mean
    var = jnp.mean(centered * centered, axis=-1, keepdims=True)
    inv = jax.lax.rsqrt(var + LN_EPS)
    return centered * inv * gamma + beta


# ---------------------------------------------------------------------------
# Kernels
# ---------------------------------------------------------------------------
def _fourier_kernel(input_dim, hidden_dim, num_cat,
                    x_ref, pmat_ref, shift_ref, w1t_ref, w1x_ref, b1_ref,
                    g1_ref, be1_ref, w2_ref, b2_ref,
                    gout_ref, beout_ref, wout_ref, bout_ref, *rest):
    cat_refs = rest[:num_cat]
    o_ref = rest[num_cat]
    f32 = jnp.float32
    cdt = w1t_ref.dtype                      # MXU operand dtype (bf16 or f32)

    x = x_ref[...].astype(f32)               # [tm, D]

    # Phase slab for cos-half and sin-half in one shot; sin(t) == cos(t - pi/2).
    phase = shift_ref[...].astype(f32)       # [1, 2*D*F], broadcasts
    for i in range(input_dim):               # tiny static unroll, pure VPU
        phase = phase + x[:, i:i + 1] * pmat_ref[i:i + 1, :].astype(f32)
    trig = jnp.cos(phase)                    # [tm, 2*D*F]

    # ONE block-diagonal first-layer matmul for all dims & both cos/sin halves.
    h_all = jnp.dot(trig.astype(cdt), w1t_ref[...],
                    preferred_element_type=f32)          # [tm, D*H] f32

    # raw-x / bias terms + per-dim LayerNorm + ReLU (f32); 128-aligned slices.
    chunks = []
    for i in range(input_dim):
        hi = (h_all[:, i * hidden_dim:(i + 1) * hidden_dim]
              + x[:, i:i + 1] * w1x_ref[i:i + 1, :].astype(f32)
              + b1_ref[i:i + 1, :].astype(f32))
        hi = _layernorm(hi, g1_ref[i:i + 1, :].astype(f32),
                        be1_ref[i:i + 1, :].astype(f32))
        chunks.append(jnp.maximum(hi, 0.0).astype(cdt))
    h_cat = chunks[0] if input_dim == 1 else jnp.concatenate(chunks, axis=-1)

    # Fused second layer: single K = D*H matmul (accumulation inside the MXU),
    # bias pre-summed over dims in the wrapper.
    acc = jnp.dot(h_cat, w2_ref[...], preferred_element_type=f32) \
        + b2_ref[...].astype(f32)

    # Categorical-embedding residual sum fused in-kernel (no HBM temp).
    for c_ref in cat_refs:
        acc = acc + c_ref[...].astype(f32)

    # to_out: LayerNorm -> ReLU -> Linear
    h = _layernorm(acc, gout_ref[...].astype(f32), beout_ref[...].astype(f32))
    h = jnp.maximum(h, 0.0)
    out = jnp.dot(h.astype(cdt), wout_ref[...], preferred_element_type=f32) \
        + bout_ref[...].astype(f32)
    o_ref[...] = out.astype(o_ref.dtype)


def _to_out_kernel(num_cat, gout_ref, beout_ref, wout_ref, bout_ref, *rest):
    # continuous_inputs is None: sum(categorical_embs) -> to_out
    cat_refs = rest[:num_cat]
    o_ref = rest[num_cat]
    f32 = jnp.float32
    cdt = wout_ref.dtype

    acc = cat_refs[0][...].astype(f32)
    for c_ref in cat_refs[1:]:
        acc = acc + c_ref[...].astype(f32)

    h = _layernorm(acc, gout_ref[...].astype(f32), beout_ref[...].astype(f32))
    h = jnp.maximum(h, 0.0)
    out = jnp.dot(h.astype(cdt), wout_ref[...], preferred_element_type=f32) \
        + bout_ref[...].astype(f32)
    o_ref[...] = out.astype(o_ref.dtype)


# ---------------------------------------------------------------------------
# Parameter repacking (done once, outside the kernel)
# ---------------------------------------------------------------------------
def prepare_params(params, compute_dtype=jnp.bfloat16):
    """Repack PyTorch-layout weights into fused / block-diagonal kernel form.

    compute_dtype is the MXU operand dtype (bfloat16 default; float32 for exact
    verification). LayerNorm / bias parameters stay float32.
    """
    f32 = jnp.float32
    freqs = params["freqs"].astype(f32)
    D, F = freqs.shape
    H = params["w_out"].shape[-1]
    sf = freqs * TWO_PI

    pmat = jnp.zeros((D, 2 * D * F), f32)          # phase = x @ pmat + shift
    w1t = jnp.zeros((2 * D * F, D * H), f32)       # block-diag [cos | sin] weights
    for i in range(D):
        pmat = pmat.at[i, i * F:(i + 1) * F].set(sf[i])
        pmat = pmat.at[i, (D + i) * F:(D + i + 1) * F].set(sf[i])
        w1t = w1t.at[i * F:(i + 1) * F, i * H:(i + 1) * H].set(
            params["w1_cos"][i].astype(f32))
        w1t = w1t.at[(D + i) * F:(D + i + 1) * F, i * H:(i + 1) * H].set(
            params["w1_sin"][i].astype(f32))
    shift = jnp.concatenate([jnp.zeros((1, D * F), f32),
                             jnp.full((1, D * F), -0.5 * math.pi, f32)], axis=-1)

    return dict(
        pmat=pmat, shift=shift,
        w1t=w1t.astype(compute_dtype),
        w1x=params["w1_x"][:, 0, :].astype(f32),               # [D, H]
        b1=params["b1"][:, 0, :].astype(f32),                  # [D, H]
        g1=params["g1"][:, 0, :].astype(f32),                  # [D, H]
        be1=params["be1"][:, 0, :].astype(f32),                # [D, H]
        w2=params["w2"].astype(f32).reshape(D * H, H).astype(compute_dtype),
        b2=params["b2"].sum(axis=0).astype(f32),               # [1, H] pre-summed
        g_out=params["g_out"].astype(f32), be_out=params["be_out"].astype(f32),
        w_out=params["w_out"].astype(compute_dtype),
        b_out=params["b_out"].astype(f32),
    )


# ---------------------------------------------------------------------------
# Wrapper
# ---------------------------------------------------------------------------
def fourier_embedding_forward(prep, continuous_inputs=None, categorical_embs=None,
                              *, tile_n=None):
    """Mirrors FourierEmbedding.forward using prepared (repacked) params."""
    hidden_dim = prep["w_out"].shape[-1]
    cats = list(categorical_embs) if categorical_embs is not None else []
    num_cat = len(cats)

    def full_spec(a):
        nd = a.ndim
        return pl.BlockSpec(tuple(a.shape), lambda i, _nd=nd: (0,) * _nd)

    def row_spec(tm_, last):
        return pl.BlockSpec((tm_, last), lambda i: (i, 0))

    # -------- branch: no continuous inputs --------
    if continuous_inputs is None:
        if num_cat == 0:
            raise ValueError("Both continuous_inputs and categorical_embs are None")
        n = cats[0].shape[0]
        out_dtype = cats[0].dtype
        tm = _choose_tile(n, tile_n)
        weights = (prep["g_out"], prep["be_out"], prep["w_out"], prep["b_out"])
        wbytes = sum(int(a.size) * a.dtype.itemsize for a in weights)
        cost = pl.CostEstimate(
            flops=int(n * (num_cat * hidden_dim + 2 * hidden_dim * hidden_dim
                           + 8 * hidden_dim)),
            transcendentals=int(n),
            bytes_accessed=int(n * hidden_dim * 4 * (num_cat + 1) + wbytes))
        return pl.pallas_call(
            functools.partial(_to_out_kernel, num_cat),
            out_shape=jax.ShapeDtypeStruct((n, hidden_dim), out_dtype),
            grid_spec=pltpu.PrefetchScalarGridSpec(
                num_scalar_prefetch=0,
                grid=(pl.cdiv(n, tm),),
                in_specs=[full_spec(a) for a in weights]
                         + [row_spec(tm, hidden_dim) for _ in cats],
                out_specs=row_spec(tm, hidden_dim)),
            compiler_params=pltpu.CompilerParams(
                dimension_semantics=("parallel",),
                vmem_limit_bytes=_VMEM_LIMIT_BYTES),
            cost_estimate=cost,
        )(*weights, *cats)

    # -------- branch: continuous inputs present --------
    x = continuous_inputs
    n, input_dim = x.shape
    nfb = prep["pmat"].shape[1] // (2 * input_dim)
    out_dtype = x.dtype
    tm = _choose_tile(n, tile_n)

    weights = (prep["pmat"], prep["shift"], prep["w1t"], prep["w1x"], prep["b1"],
               prep["g1"], prep["be1"], prep["w2"], prep["b2"],
               prep["g_out"], prep["be_out"], prep["w_out"], prep["b_out"])
    in_specs = ([row_spec(tm, input_dim)]
                + [full_spec(a) for a in weights]
                + [row_spec(tm, hidden_dim) for _ in cats])
    wbytes = sum(int(a.size) * a.dtype.itemsize for a in weights)
    flops = int(n * (2 * (2 * input_dim * nfb) * input_dim * hidden_dim   # trig dot
                     + 2 * input_dim * hidden_dim * hidden_dim            # fused w2
                     + 2 * hidden_dim * hidden_dim                        # to_out
                     + (input_dim + 1) * 10 * hidden_dim                  # LN/ReLU/bias
                     + num_cat * hidden_dim))
    cost = pl.CostEstimate(
        flops=flops,
        transcendentals=int(n * (2 * input_dim * nfb + input_dim + 1)),
        bytes_accessed=int(n * (input_dim * 4 + (num_cat + 1) * hidden_dim * 4)
                           + wbytes))

    return pl.pallas_call(
        functools.partial(_fourier_kernel, input_dim, hidden_dim, num_cat),
        out_shape=jax.ShapeDtypeStruct((n, hidden_dim), out_dtype),
        grid_spec=pltpu.PrefetchScalarGridSpec(
            num_scalar_prefetch=0,
            grid=(pl.cdiv(n, tm),),
            in_specs=in_specs,
            out_specs=row_spec(tm, hidden_dim)),
        compiler_params=pltpu.CompilerParams(
            dimension_semantics=("parallel",),
            vmem_limit_bytes=_VMEM_LIMIT_BYTES),
        cost_estimate=cost,
    )(x, *weights, *cats)


# ---------------------------------------------------------------------------
# Parameters / pure-JAX reference (PyTorch-layout)
# ---------------------------------------------------------------------------
def init_params(key, input_dim, hidden_dim, num_freq_bands, dtype=jnp.float32):
    ks = jax.random.split(key, 9)
    freqs = jax.random.normal(ks[0], (input_dim, num_freq_bands), dtype)
    w1_cos = jax.random.normal(ks[1], (input_dim, num_freq_bands, hidden_dim), dtype) * 0.1
    w1_sin = jax.random.normal(ks[2], (input_dim, num_freq_bands, hidden_dim), dtype) * 0.1
    w1_x = jax.random.normal(ks[3], (input_dim, 1, hidden_dim), dtype) * 0.1
    b1 = jax.random.normal(ks[4], (input_dim, 1, hidden_dim), dtype) * 0.01
    w2 = jax.random.normal(ks[5], (input_dim, hidden_dim, hidden_dim), dtype) * 0.1
    b2 = jax.random.normal(ks[6], (input_dim, 1, hidden_dim), dtype) * 0.01
    w_out = jax.random.normal(ks[7], (hidden_dim, hidden_dim), dtype) * 0.1
    b_out = jax.random.normal(ks[8], (1, hidden_dim), dtype) * 0.01
    g1 = jnp.ones((input_dim, 1, hidden_dim), dtype)
    be1 = jnp.zeros((input_dim, 1, hidden_dim), dtype)
    g_out = jnp.ones((1, hidden_dim), dtype)
    be_out = jnp.zeros((1, hidden_dim), dtype)
    return dict(freqs=freqs, w1_cos=w1_cos, w1_sin=w1_sin, w1_x=w1_x, b1=b1,
                g1=g1, be1=be1, w2=w2, b2=b2,
                g_out=g_out, be_out=be_out, w_out=w_out, b_out=b_out)


def _reference(params, continuous_inputs=None, categorical_embs=None):
    """Pure-JAX mirror of PyTorch FourierEmbedding.forward (concat formulation)."""
    if continuous_inputs is None:
        acc = jnp.stack(categorical_embs).sum(axis=0)
    else:
        x = continuous_inputs
        input_dim = params["freqs"].shape[0]
        embs = []
        for i in range(input_dim):
            xi = x[:, i:i + 1]
            phase = xi * params["freqs"][i][None, :] * TWO_PI
            feats = jnp.concatenate([jnp.cos(phase), jnp.sin(phase), xi], axis=-1)
            w1 = jnp.concatenate([params["w1_cos"][i], params["w1_sin"][i],
                                  params["w1_x"][i]], axis=0)
            h = feats @ w1 + params["b1"][i]
            h = _layernorm(h, params["g1"][i], params["be1"][i])
            h = jnp.maximum(h, 0.0)
            embs.append(h @ params["w2"][i] + params["b2"][i])
        acc = jnp.stack(embs).sum(axis=0)
        if categorical_embs is not None:
            acc = acc + jnp.stack(categorical_embs).sum(axis=0)
    h = _layernorm(acc, params["g_out"], params["be_out"])
    h = jnp.maximum(h, 0.0)
    return h @ params["w_out"] + params["b_out"]


if __name__ == "__main__":
    input_dim = 2
    hidden_dim = 128        # lane-dense output (multiple of 128)
    num_freq_bands = 8
    n = 20                  # NOT a multiple of 8 -> exercises the ragged last tile

    key = jax.random.PRNGKey(0)
    kp, kx, kc1, kc2 = jax.random.split(key, 4)
    params = init_params(kp, input_dim, hidden_dim, num_freq_bands)
    x = jax.random.normal(kx, (n, input_dim), jnp.float32)
    cat_embs = [jax.random.normal(kc1, (n, hidden_dim), jnp.float32),
                jax.random.normal(kc2, (n, hidden_dim), jnp.float32)]

    ref = _reference(params, x, cat_embs)

    # f32 MXU operands: exact math check of fusion/repacking.
    prep32 = prepare_params(params, compute_dtype=jnp.float32)
    out32 = jax.block_until_ready(fourier_embedding_forward(prep32, x, cat_embs))
    assert out32.shape == (n, hidden_dim)
    assert jnp.allclose(out32, ref, atol=1e-3, rtol=1e-3), "f32 mismatch vs reference"

    # bf16 MXU operands (default fast path) -> looser tolerance.
    prep = prepare_params(params)
    out = jax.block_until_ready(fourier_embedding_forward(prep, x, cat_embs))
    assert jnp.allclose(out, ref, atol=1e-1, rtol=1e-1), "bf16 mismatch vs reference"

    # explicit small tile -> multi-step grid + ragged last tile (4 valid rows).
    out_t = jax.block_until_ready(
        fourier_embedding_forward(prep32, x, cat_embs, tile_n=8))
    assert jnp.allclose(out_t, ref, atol=1e-3, rtol=1e-3), "tiled mismatch"

    # no categorical embeddings -> no dead zeros tensor DMA'd into the kernel.
    out_nc = jax.block_until_ready(fourier_embedding_forward(prep32, x, None))
    ref_nc = _reference(params, x, None)
    assert jnp.allclose(out_nc, ref_nc, atol=1e-3, rtol=1e-3), "no-cat mismatch"

    # continuous_inputs is None -> sum(categorical_embs) -> to_out.
    out_cat = jax.block_until_ready(fourier_embedding_forward(prep32, None, cat_embs))
    ref_cat = _reference(params, None, cat_embs)
    assert jnp.allclose(out_cat, ref_cat, atol=1e-3, rtol=1e-3), "cat-only mismatch"

    print("KERNEL_OK")
</pallas_src>

<mosaic_0001>
module attributes {stable_mosaic.version = 11 : i64} {
  func.func @_fourier_kernel(%arg0: i32, %arg1: memref<16x2xf32, #tpu.memory_space<vmem>>, %arg2: memref<2x32xf32, #tpu.memory_space<vmem>>, %arg3: memref<1x32xf32, #tpu.memory_space<vmem>>, %arg4: memref<32x256xf32, #tpu.memory_space<vmem>>, %arg5: memref<2x128xf32, #tpu.memory_space<vmem>>, %arg6: memref<2x128xf32, #tpu.memory_space<vmem>>, %arg7: memref<2x128xf32, #tpu.memory_space<vmem>>, %arg8: memref<2x128xf32, #tpu.memory_space<vmem>>, %arg9: memref<256x128xf32, #tpu.memory_space<vmem>>, %arg10: memref<1x128xf32, #tpu.memory_space<vmem>>, %arg11: memref<1x128xf32, #tpu.memory_space<vmem>>, %arg12: memref<1x128xf32, #tpu.memory_space<vmem>>, %arg13: memref<128x128xf32, #tpu.memory_space<vmem>>, %arg14: memref<1x128xf32, #tpu.memory_space<vmem>>, %arg15: memref<16x128xf32, #tpu.memory_space<vmem>>, %arg16: memref<16x128xf32, #tpu.memory_space<vmem>>, %arg17: memref<16x128xf32, #tpu.memory_space<vmem>>) attributes {dimension_semantics = [#tpu.dimension_semantics<parallel>], iteration_bounds = array<i64: 2>, scalar_prefetch = 0 : i64, scratch_operands = 0 : i64, tpu.core_type = #tpu.core_type<tc>, window_params = [{transform_indices = @transform_0, window_bounds = array<i64: 16, 2>}, {pipeline_mode = #tpu.pipeline_mode<synchronous>, transform_indices = @transform_1, window_bounds = array<i64: 2, 32>}, {pipeline_mode = #tpu.pipeline_mode<synchronous>, transform_indices = @transform_2, window_bounds = array<i64: 1, 32>}, {pipeline_mode = #tpu.pipeline_mode<synchronous>, transform_indices = @transform_3, window_bounds = array<i64: 32, 256>}, {pipeline_mode = #tpu.pipeline_mode<synchronous>, transform_indices = @transform_4, window_bounds = array<i64: 2, 128>}, {pipeline_mode = #tpu.pipeline_mode<synchronous>, transform_indices = @transform_5, window_bounds = array<i64: 2, 128>}, {pipeline_mode = #tpu.pipeline_mode<synchronous>, transform_indices = @transform_6, window_bounds = array<i64: 2, 128>}, {pipeline_mode = #tpu.pipeline_mode<synchronous>, transform_indices = @transform_7, window_bounds = array<i64: 2, 128>}, {pipeline_mode = #tpu.pipeline_mode<synchronous>, transform_indices = @transform_8, window_bounds = array<i64: 256, 128>}, {pipeline_mode = #tpu.pipeline_mode<synchronous>, transform_indices = @transform_9, window_bounds = array<i64: 1, 128>}, {pipeline_mode = #tpu.pipeline_mode<synchronous>, transform_indices = @transform_10, window_bounds = array<i64: 1, 128>}, {pipeline_mode = #tpu.pipeline_mode<synchronous>, transform_indices = @transform_11, window_bounds = array<i64: 1, 128>}, {pipeline_mode = #tpu.pipeline_mode<synchronous>, transform_indices = @transform_12, window_bounds = array<i64: 128, 128>}, {pipeline_mode = #tpu.pipeline_mode<synchronous>, transform_indices = @transform_13, window_bounds = array<i64: 1, 128>}, {transform_indices = @transform_14, window_bounds = array<i64: 16, 128>}, {transform_indices = @transform_15, window_bounds = array<i64: 16, 128>}, {transform_indices = @transform_16, window_bounds = array<i64: 16, 128>}]} {
    %c0 = arith.constant 0 : index
    %c0_0 = arith.constant 0 : index
    %0 = vector.load %arg1[%c0, %c0_0] : memref<16x2xf32, #tpu.memory_space<vmem>>, vector<16x2xf32>
    %c0_1 = arith.constant 0 : index
    %c0_2 = arith.constant 0 : index
    %1 = vector.load %arg3[%c0_1, %c0_2] : memref<1x32xf32, #tpu.memory_space<vmem>>, vector<1x32xf32>
    %2 = vector.extract_strided_slice %0 {offsets = [0, 0], sizes = [16, 1], strides = [1, 1]} : vector<16x2xf32> to vector<16x1xf32>
    %c0_3 = arith.constant 0 : index
    %c0_4 = arith.constant 0 : index
    %3 = vector.load %arg2[%c0_3, %c0_4] : memref<2x32xf32, #tpu.memory_space<vmem>>, vector<1x32xf32>
    %4 = vector.broadcast %2 : vector<16x1xf32> to vector<16x32xf32>
    %5 = vector.broadcast %3 : vector<1x32xf32> to vector<16x32xf32>
    %6 = arith.mulf %4, %5 : vector<16x32xf32>
    %7 = vector.broadcast %1 : vector<1x32xf32> to vector<16x32xf32>
    %8 = arith.addf %7, %6 : vector<16x32xf32>
    %9 = vector.extract_strided_slice %0 {offsets = [0, 1], sizes = [16, 1], strides = [1, 1]} : vector<16x2xf32> to vector<16x1xf32>
    %c1 = arith.constant 1 : index
    %c0_5 = arith.constant 0 : index
    %10 = vector.load %arg2[%c1, %c0_5] : memref<2x32xf32, #tpu.memory_space<vmem>>, vector<1x32xf32>
    %11 = vector.broadcast %9 : vector<16x1xf32> to vector<16x32xf32>
    %12 = vector.broadcast %10 : vector<1x32xf32> to vector<16x32xf32>
    %13 = arith.mulf %11, %12 : vector<16x32xf32>
    %14 = arith.addf %8, %13 : vector<16x32xf32>
    %15 = math.cos %14 : vector<16x32xf32>
    %c0_6 = arith.constant 0 : index
    %c0_7 = arith.constant 0 : index
    %16 = vector.load %arg4[%c0_6, %c0_7] : memref<32x256xf32, #tpu.memory_space<vmem>>, vector<32x256xf32>
    %cst = arith.constant dense<0.000000e+00> : vector<16x256xf32>
    %17 = tpu.matmul %15, %16, %cst {dimension_numbers = #tpu.dot_dimension_numbers<[1], [0], [0], [1], [0, 0, 1, 1], [], []>} : vector<16x32xf32>, vector<32x256xf32>, vector<16x256xf32> -> vector<16x256xf32>
    %18 = vector.extract_strided_slice %17 {offsets = [0, 0], sizes = [16, 128], strides = [1, 1]} : vector<16x256xf32> to vector<16x128xf32>
    %19 = vector.extract_strided_slice %0 {offsets = [0, 0], sizes = [16, 1], strides = [1, 1]} : vector<16x2xf32> to vector<16x1xf32>
    %c0_8 = arith.constant 0 : index
    %c0_9 = arith.constant 0 : index
    %20 = vector.load %arg5[%c0_8, %c0_9] : memref<2x128xf32, #tpu.memory_space<vmem>>, vector<1x128xf32>
    %21 = vector.broadcast %19 : vector<16x1xf32> to vector<16x128xf32>
    %22 = vector.broadcast %20 : vector<1x128xf32> to vector<16x128xf32>
    %23 = arith.mulf %21, %22 : vector<16x128xf32>
    %24 = arith.addf %18, %23 : vector<16x128xf32>
    %c0_10 = arith.constant 0 : index
    %c0_11 = arith.constant 0 : index
    %25 = vector.load %arg6[%c0_10, %c0_11] : memref<2x128xf32, #tpu.memory_space<vmem>>, vector<1x128xf32>
    %26 = vector.broadcast %25 : vector<1x128xf32> to vector<16x128xf32>
    %27 = arith.addf %24, %26 : vector<16x128xf32>
    %c0_12 = arith.constant 0 : index
    %c0_13 = arith.constant 0 : index
    %28 = vector.load %arg7[%c0_12, %c0_13] : memref<2x128xf32, #tpu.memory_space<vmem>>, vector<1x128xf32>
    %c0_14 = arith.constant 0 : index
    %c0_15 = arith.constant 0 : index
    %29 = vector.load %arg8[%c0_14, %c0_15] : memref<2x128xf32, #tpu.memory_space<vmem>>, vector<1x128xf32>
    %cst_16 = arith.constant dense<0.000000e+00> : vector<16xf32>
    %30 = vector.multi_reduction <add>, %27, %cst_16 [1] : vector<16x128xf32> to vector<16xf32>
    %31 = vector.shape_cast %30 : vector<16xf32> to vector<16x1xf32>
    %cst_17 = arith.constant 1.280000e+02 : f32
    %32 = vector.broadcast %cst_17 : f32 to vector<16x1xf32>
    %33 = arith.divf %31, %32 : vector<16x1xf32>
    %34 = vector.broadcast %33 : vector<16x1xf32> to vector<16x128xf32>
    %35 = arith.subf %27, %34 : vector<16x128xf32>
    %36 = arith.mulf %35, %35 : vector<16x128xf32>
    %cst_18 = arith.constant dense<0.000000e+00> : vector<16xf32>
    %37 = vector.multi_reduction <add>, %36, %cst_18 [1] : vector<16x128xf32> to vector<16xf32>
    %38 = vector.shape_cast %37 : vector<16xf32> to vector<16x1xf32>
    %cst_19 = arith.constant 1.280000e+02 : f32
    %39 = vector.broadcast %cst_19 : f32 to vector<16x1xf32>
    %40 = arith.divf %38, %39 : vector<16x1xf32>
    %cst_20 = arith.constant 9.99999974E-6 : f32
    %41 = vector.broadcast %cst_20 : f32 to vector<16x1xf32>
    %42 = arith.addf %40, %41 : vector<16x1xf32>
    %43 = math.rsqrt %42 : vector<16x1xf32>
    %44 = vector.broadcast %43 : vector<16x1xf32> to vector<16x128xf32>
    %45 = arith.mulf %35, %44 : vector<16x128xf32>
    %46 = vector.broadcast %28 : vector<1x128xf32> to vector<16x128xf32>
    %47 = arith.mulf %45, %46 : vector<16x128xf32>
    %48 = vector.broadcast %29 : vector<1x128xf32> to vector<16x128xf32>
    %49 = arith.addf %47, %48 : vector<16x128xf32>
    %cst_21 = arith.constant 0.000000e+00 : f32
    %50 = vector.broadcast %cst_21 : f32 to vector<16x128xf32>
    %51 = arith.maximumf %49, %50 : vector<16x128xf32>
    %52 = vector.extract_strided_slice %17 {offsets = [0, 128], sizes = [16, 128], strides = [1, 1]} : vector<16x256xf32> to vector<16x128xf32>
    %53 = vector.extract_strided_slice %0 {offsets = [0, 1], sizes = [16, 1], strides = [1, 1]} : vector<16x2xf32> to vector<16x1xf32>
    %c1_22 = arith.constant 1 : index
    %c0_23 = arith.constant 0 : index
    %54 = vector.load %arg5[%c1_22, %c0_23] : memref<2x128xf32, #tpu.memory_space<vmem>>, vector<1x128xf32>
    %55 = vector.broadcast %53 : vector<16x1xf32> to vector<16x128xf32>
    %56 = vector.broadcast %54 : vector<1x128xf32> to vector<16x128xf32>
    %57 = arith.mulf %55, %56 : vector<16x128xf32>
    %58 = arith.addf %52, %57 : vector<16x128xf32>
    %c1_24 = arith.constant 1 : index
    %c0_25 = arith.constant 0 : index
    %59 = vector.load %arg6[%c1_24, %c0_25] : memref<2x128xf32, #tpu.memory_space<vmem>>, vector<1x128xf32>
    %60 = vector.broadcast %59 : vector<1x128xf32> to vector<16x128xf32>
    %61 = arith.addf %58, %60 : vector<16x128xf32>
    %c1_26 = arith.constant 1 : index
    %c0_27 = arith.constant 0 : index
    %62 = vector.load %arg7[%c1_26, %c0_27] : memref<2x128xf32, #tpu.memory_space<vmem>>, vector<1x128xf32>
    %c1_28 = arith.constant 1 : index
    %c0_29 = arith.constant 0 : index
    %63 = vector.load %arg8[%c1_28, %c0_29] : memref<2x128xf32, #tpu.memory_space<vmem>>, vector<1x128xf32>
    %cst_30 = arith.constant dense<0.000000e+00> : vector<16xf32>
    %64 = vector.multi_reduction <add>, %61, %cst_30 [1] : vector<16x128xf32> to vector<16xf32>
    %65 = vector.shape_cast %64 : vector<16xf32> to vector<16x1xf32>
    %cst_31 = arith.constant 1.280000e+02 : f32
    %66 = vector.broadcast %cst_31 : f32 to vector<16x1xf32>
    %67 = arith.divf %65, %66 : vector<16x1xf32>
    %68 = vector.broadcast %67 : vector<16x1xf32> to vector<16x128xf32>
    %69 = arith.subf %61, %68 : vector<16x128xf32>
    %70 = arith.mulf %69, %69 : vector<16x128xf32>
    %cst_32 = arith.constant dense<0.000000e+00> : vector<16xf32>
    %71 = vector.multi_reduction <add>, %70, %cst_32 [1] : vector<16x128xf32> to vector<16xf32>
    %72 = vector.shape_cast %71 : vector<16xf32> to vector<16x1xf32>
    %cst_33 = arith.constant 1.280000e+02 : f32
    %73 = vector.broadcast %cst_33 : f32 to vector<16x1xf32>
    %74 = arith.divf %72, %73 : vector<16x1xf32>
    %cst_34 = arith.constant 9.99999974E-6 : f32
    %75 = vector.broadcast %cst_34 : f32 to vector<16x1xf32>
    %76 = arith.addf %74, %75 : vector<16x1xf32>
    %77 = math.rsqrt %76 : vector<16x1xf32>
    %78 = vector.broadcast %77 : vector<16x1xf32> to vector<16x128xf32>
    %79 = arith.mulf %69, %78 : vector<16x128xf32>
    %80 = vector.broadcast %62 : vector<1x128xf32> to vector<16x128xf32>
    %81 = arith.mulf %79, %80 : vector<16x128xf32>
    %82 = vector.broadcast %63 : vector<1x128xf32> to vector<16x128xf32>
    %83 = arith.addf %81, %82 : vector<16x128xf32>
    %cst_35 = arith.constant 0.000000e+00 : f32
    %84 = vector.broadcast %cst_35 : f32 to vector<16x128xf32>
    %85 = arith.maximumf %83, %84 : vector<16x128xf32>
    %86 = tpu.concatenate %51, %85 in 1 : vector<16x128xf32>, vector<16x128xf32> -> vector<16x256xf32>
    %c0_36 = arith.constant 0 : index
    %c0_37 = arith.constant 0 : index
    %87 = vector.load %arg9[%c0_36, %c0_37] : memref<256x128xf32, #tpu.memory_space<vmem>>, vector<256x128xf32>
    %cst_38 = arith.constant dense<0.000000e+00> : vector<16x128xf32>
    %88 = tpu.matmul %86, %87, %cst_38 {dimension_numbers = #tpu.dot_dimension_numbers<[1], [0], [0], [1], [0, 0, 1, 1], [], []>} : vector<16x256xf32>, vector<256x128xf32>, vector<16x128xf32> -> vector<16x128xf32>
    %c0_39 = arith.constant 0 : index
    %c0_40 = arith.constant 0 : index
    %89 = vector.load %arg10[%c0_39, %c0_40] : memref<1x128xf32, #tpu.memory_space<vmem>>, vector<1x128xf32>
    %90 = vector.broadcast %89 : vector<1x128xf32> to vector<16x128xf32>
    %91 = arith.addf %88, %90 : vector<16x128xf32>
    %c0_41 = arith.constant 0 : index
    %c0_42 = arith.constant 0 : index
    %92 = vector.load %arg15[%c0_41, %c0_42] : memref<16x128xf32, #tpu.memory_space<vmem>>, vector<16x128xf32>
    %93 = arith.addf %91, %92 : vector<16x128xf32>
    %c0_43 = arith.constant 0 : index
    %c0_44 = arith.constant 0 : index
    %94 = vector.load %arg16[%c0_43, %c0_44] : memref<16x128xf32, #tpu.memory_space<vmem>>, vector<16x128xf32>
    %95 = arith.addf %93, %94 : vector<16x128xf32>
    %c0_45 = arith.constant 0 : index
    %c0_46 = arith.constant 0 : index
    %96 = vector.load %arg11[%c0_45, %c0_46] : memref<1x128xf32, #tpu.memory_space<vmem>>, vector<1x128xf32>
    %c0_47 = arith.constant 0 : index
    %c0_48 = arith.constant 0 : index
    %97 = vector.load %arg12[%c0_47, %c0_48] : memref<1x128xf32, #tpu.memory_space<vmem>>, vector<1x128xf32>
    %cst_49 = arith.constant dense<0.000000e+00> : vector<16xf32>
    %98 = vector.multi_reduction <add>, %95, %cst_49 [1] : vector<16x128xf32> to vector<16xf32>
    %99 = vector.shape_cast %98 : vector<16xf32> to vector<16x1xf32>
    %cst_50 = arith.constant 1.280000e+02 : f32
    %100 = vector.broadcast %cst_50 : f32 to vector<16x1xf32>
    %101 = arith.divf %99, %100 : vector<16x1xf32>
    %102 = vector.broadcast %101 : vector<16x1xf32> to vector<16x128xf32>
    %103 = arith.subf %95, %102 : vector<16x128xf32>
    %104 = arith.mulf %103, %103 : vector<16x128xf32>
    %cst_51 = arith.constant dense<0.000000e+00> : vector<16xf32>
    %105 = vector.multi_reduction <add>, %104, %cst_51 [1] : vector<16x128xf32> to vector<16xf32>
    %106 = vector.shape_cast %105 : vector<16xf32> to vector<16x1xf32>
    %cst_52 = arith.constant 1.280000e+02 : f32
    %107 = vector.broadcast %cst_52 : f32 to vector<16x1xf32>
    %108 = arith.divf %106, %107 : vector<16x1xf32>
    %cst_53 = arith.constant 9.99999974E-6 : f32
    %109 = vector.broadcast %cst_53 : f32 to vector<16x1xf32>
    %110 = arith.addf %108, %109 : vector<16x1xf32>
    %111 = math.rsqrt %110 : vector<16x1xf32>
    %112 = vector.broadcast %111 : vector<16x1xf32> to vector<16x128xf32>
    %113 = arith.mulf %103, %112 : vector<16x128xf32>
    %114 = vector.broadcast %96 : vector<1x128xf32> to vector<16x128xf32>
    %115 = arith.mulf %113, %114 : vector<16x128xf32>
    %116 = vector.broadcast %97 : vector<1x128xf32> to vector<16x128xf32>
    %117 = arith.addf %115, %116 : vector<16x128xf32>
    %cst_54 = arith.constant 0.000000e+00 : f32
    %118 = vector.broadcast %cst_54 : f32 to vector<16x128xf32>
    %119 = arith.maximumf %117, %118 : vector<16x128xf32>
    %c0_55 = arith.constant 0 : index
    %c0_56 = arith.constant 0 : index
    %120 = vector.load %arg13[%c0_55, %c0_56] : memref<128x128xf32, #tpu.memory_space<vmem>>, vector<128x128xf32>
    %cst_57 = arith.constant dense<0.000000e+00> : vector<16x128xf32>
    %121 = tpu.matmul %119, %120, %cst_57 {dimension_numbers = #tpu.dot_dimension_numbers<[1], [0], [0], [1], [0, 0, 1, 1], [], []>} : vector<16x128xf32>, vector<128x128xf32>, vector<16x128xf32> -> vector<16x128xf32>
    %c0_58 = arith.constant 0 : index
    %c0_59 = arith.constant 0 : index
    %122 = vector.load %arg14[%c0_58, %c0_59] : memref<1x128xf32, #tpu.memory_space<vmem>>, vector<1x128xf32>
    %123 = vector.broadcast %122 : vector<1x128xf32> to vector<16x128xf32>
    %124 = arith.addf %121, %123 : vector<16x128xf32>
    %c0_60 = arith.constant 0 : index
    %c0_61 = arith.constant 0 : index
    %125 = vector.load %arg17[%c0_60, %c0_61] : memref<16x128xf32, #tpu.memory_space<vmem>>, vector<16x128xf32>
    tpu.vector_store %arg17[%c0_60, %c0_61], %124 {strides = array<i32>} : memref<16x128xf32, #tpu.memory_space<vmem>>, vector<16x128xf32>,
    return
  }
  func.func @transform_0(%arg0: i32) -> (i32, i32) {
    %c0_i32 = arith.constant 0 : i32
    %c0_i32_0 = arith.constant 0 : i32
    return %arg0, %c0_i32 : i32, i32
  }
  func.func @transform_1(%arg0: i32) -> (i32, i32) {
    %c0_i32 = arith.constant 0 : i32
    %c0_i32_0 = arith.constant 0 : i32
    %c0_i32_1 = arith.constant 0 : i32
    return %c0_i32, %c0_i32_0 : i32, i32
  }
  func.func @transform_2(%arg0: i32) -> (i32, i32) {
    %c0_i32 = arith.constant 0 : i32
    %c0_i32_0 = arith.constant 0 : i32
    %c0_i32_1 = arith.constant 0 : i32
    return %c0_i32, %c0_i32_0 : i32, i32
  }
  func.func @transform_3(%arg0: i32) -> (i32, i32) {
    %c0_i32 = arith.constant 0 : i32
    %c0_i32_0 = arith.constant 0 : i32
    %c0_i32_1 = arith.constant 0 : i32
    return %c0_i32, %c0_i32_0 : i32, i32
  }
  func.func @transform_4(%arg0: i32) -> (i32, i32) {
    %c0_i32 = arith.constant 0 : i32
    %c0_i32_0 = arith.constant 0 : i32
    %c0_i32_1 = arith.constant 0 : i32
    return %c0_i32, %c0_i32_0 : i32, i32
  }
  func.func @transform_5(%arg0: i32) -> (i32, i32) {
    %c0_i32 = arith.constant 0 : i32
    %c0_i32_0 = arith.constant 0 : i32
    %c0_i32_1 = arith.constant 0 : i32
    return %c0_i32, %c0_i32_0 : i32, i32
  }
  func.func @transform_6(%arg0: i32) -> (i32, i32) {
    %c0_i32 = arith.constant 0 : i32
    %c0_i32_0 = arith.constant 0 : i32
    %c0_i32_1 = arith.constant 0 : i32
    return %c0_i32, %c0_i32_0 : i32, i32
  }
  func.func @transform_7(%arg0: i32) -> (i32, i32) {
    %c0_i32 = arith.constant 0 : i32
    %c0_i32_0 = arith.constant 0 : i32
    %c0_i32_1 = arith.constant 0 : i32
    return %c0_i32, %c0_i32_0 : i32, i32
  }
  func.func @transform_8(%arg0: i32) -> (i32, i32) {
    %c0_i32 = arith.constant 0 : i32
    %c0_i32_0 = arith.constant 0 : i32
    %c0_i32_1 = arith.constant 0 : i32
    return %c0_i32, %c0_i32_0 : i32, i32
  }
  func.func @transform_9(%arg0: i32) -> (i32, i32) {
    %c0_i32 = arith.constant 0 : i32
    %c0_i32_0 = arith.constant 0 : i32
    %c0_i32_1 = arith.constant 0 : i32
    return %c0_i32, %c0_i32_0 : i32, i32
  }
  func.func @transform_10(%arg0: i32) -> (i32, i32) {
    %c0_i32 = arith.constant 0 : i32
    %c0_i32_0 = arith.constant 0 : i32
    %c0_i32_1 = arith.constant 0 : i32
    return %c0_i32, %c0_i32_0 : i32, i32
  }
  func.func @transform_11(%arg0: i32) -> (i32, i32) {
    %c0_i32 = arith.constant 0 : i32
    %c0_i32_0 = arith.constant 0 : i32
    %c0_i32_1 = arith.constant 0 : i32
    return %c0_i32, %c0_i32_0 : i32, i32
  }
  func.func @transform_12(%arg0: i32) -> (i32, i32) {
    %c0_i32 = arith.constant 0 : i32
    %c0_i32_0 = arith.constant 0 : i32
    %c0_i32_1 = arith.constant 0 : i32
    return %c0_i32, %c0_i32_0 : i32, i32
  }
  func.func @transform_13(%arg0: i32) -> (i32, i32) {
    %c0_i32 = arith.constant 0 : i32
    %c0_i32_0 = arith.constant 0 : i32
    %c0_i32_1 = arith.constant 0 : i32
    return %c0_i32, %c0_i32_0 : i32, i32
  }
  func.func @transform_14(%arg0: i32) -> (i32, i32) {
    %c0_i32 = arith.constant 0 : i32
    %c0_i32_0 = arith.constant 0 : i32
    return %arg0, %c0_i32 : i32, i32
  }
  func.func @transform_15(%arg0: i32) -> (i32, i32) {
    %c0_i32 = arith.constant 0 : i32
    %c0_i32_0 = arith.constant 0 : i32
    return %arg0, %c0_i32 : i32, i32
  }
  func.func @transform_16(%arg0: i32) -> (i32, i32) {
    %c0_i32 = arith.constant 0 : i32
    %c0_i32_0 = arith.constant 0 : i32
    return %arg0, %c0_i32 : i32, i32
  }
}

</mosaic_0001>

<llo_original>
// kernel: tpu_custom_call.1
$region0: #{tpu_custom_call.1}
  #allocation0 [shape = 'u32[]', space=smem, size = 0x4, offset = 0x4, fixed_abs, tag = 'smem constant byte address 0x4 - core index']
  #allocation1 [shape = 'u32[144,128]{1,0:T(1,128)}', space=vmem, size = 0x12000, scoped, tag = 'internal scratch']
  %s0 = inlined_call_operand.vmem [shape: f32[20,2], index: 0, kind: input, shape index: {}]
  %s1 = inlined_call_operand.hbm [shape: f32[2,32], index: 1, kind: input, shape index: {}]
  %s2 = inlined_call_operand.vmem [shape: f32[1,32], index: 2, kind: input, shape index: {}]
  %s3 = inlined_call_operand.hbm [shape: f32[32,256], index: 3, kind: input, shape index: {}]
  %s4 = inlined_call_operand.hbm [shape: f32[2,128], index: 4, kind: input, shape index: {}]
  %s5 = inlined_call_operand.hbm [shape: f32[2,128], index: 5, kind: input, shape index: {}]
  %s6 = inlined_call_operand.hbm [shape: f32[2,128], index: 6, kind: input, shape index: {}]
  %s7 = inlined_call_operand.hbm [shape: f32[2,128], index: 7, kind: input, shape index: {}]
  %s8 = inlined_call_operand.hbm [shape: f32[256,128], index: 8, kind: input, shape index: {}]
  %s9 = inlined_call_operand.hbm [shape: f32[1,128], index: 9, kind: input, shape index: {}]
  %s10 = inlined_call_operand.hbm [shape: f32[1,128], index: 10, kind: input, shape index: {}]
  %s11 = inlined_call_operand.hbm [shape: f32[1,128], index: 11, kind: input, shape index: {}]
  %s12 = inlined_call_operand.hbm [shape: f32[128,128], index: 12, kind: input, shape index: {}]
  %s13 = inlined_call_operand.hbm [shape: f32[1,128], index: 13, kind: input, shape index: {}]
  %s14 = inlined_call_operand.vmem [shape: f32[20,128], index: 14, kind: input, shape index: {}]
  %s15 = inlined_call_operand.vmem [shape: f32[20,128], index: 15, kind: input, shape index: {}]
  %s16 = inlined_call_operand.hbm [shape: f32[20,128], index: 16, kind: output, shape index: {}]
  %s17 = sld [smem:[#allocation0]]
  $region145: #{tpu_custom_call.1} parent=0
    _
  %s19 = ssub.s32 1, %s17
  %s20 = scalar_select 0, %s19, %s17
  $region1: #{tpu_custom_call.1} parent=0
    #allocation2 [shape = 'u8[1024]{0}', space=vmem, size = 0x400, scoped, tag = 'input window, operand 1, single buffered']
    #allocation3 [shape = 's32[2]{0}', space=sflag, size = 0x8, scoped, tag = 'scoped memory for tpu_custom_call.1']
    #allocation4 [shape = 's32[2]{0}', space=sflag, size = 0x8, scoped, tag = 'scoped memory for tpu_custom_call.1']
    #allocation5 [shape = 'u8[32768]{0}', space=vmem, size = 0x8000, scoped, tag = 'input window, operand 3, single buffered']
    #allocation6 [shape = 's32[1]{0}', space=sflag, size = 0x4, scoped, tag = 'scoped memory for tpu_custom_call.1']
    #allocation7 [shape = 'u8[1024]{0}', space=vmem, size = 0x400, scoped, tag = 'input window, operand 4, single buffered']
    #allocation8 [shape = 'u8[1024]{0}', space=vmem, size = 0x400, scoped, tag = 'input window, operand 5, single buffered']
    #allocation9 [shape = 's32[1]{0}', space=sflag, size = 0x4, scoped, tag = 'scoped memory for tpu_custom_call.1']
    #allocation10 [shape = 'u8[1024]{0}', space=vmem, size = 0x400, scoped, tag = 'input window, operand 6, single buffered']
    #allocation11 [shape = 'u8[1024]{0}', space=vmem, size = 0x400, scoped, tag = 'input window, operand 7, single buffered']
    #allocation12 [shape = 's32[1]{0}', space=sflag, size = 0x4, scoped, tag = 'scoped memory for tpu_custom_call.1']
    #allocation13 [shape = 'u8[131072]{0}', space=vmem, size = 0x20000, scoped, tag = 'input window, operand 8, single buffered']
    #allocation14 [shape = 'u8[512]{0}', space=vmem, size = 0x400, scoped, tag = 'input window, operand 9, single buffered']
    #allocation15 [shape = 's32[1]{0}', space=sflag, size = 0x4, scoped, tag = 'scoped memory for tpu_custom_call.1']
    #allocation16 [shape = 'u8[512]{0}', space=vmem, size = 0x400, scoped, tag = 'input window, operand 10, single buffered']
    #allocation17 [shape = 'u8[512]{0}', space=vmem, size = 0x400, scoped, tag = 'input window, operand 11, single buffered']
    #allocation18 [shape = 's32[1]{0}', space=sflag, size = 0x4, scoped, tag = 'scoped memory for tpu_custom_call.1']
    #allocation19 [shape = 'u8[65536]{0}', space=vmem, size = 0x10000, scoped, tag = 'input window, operand 12, single buffered']
    #allocation20 [shape = 'u8[512]{0}', space=vmem, size = 0x400, scoped, tag = 'input window, operand 13, single buffered']
    #allocation21 [shape = 's32[1]{0}', space=sflag, size = 0x4, scoped, tag = 'scoped memory for tpu_custom_call.1']
    #allocation22 [shape = 'u8[16384]{0}', space=vmem, size = 0x4000, scoped, tag = 'output window, operand 0']
    %21 = vsyncpa [#allocation3], 0
    %22 = vsyncpa [#allocation6], 0
    %23 = vsyncpa [#allocation9], 0
    %24 = vsyncpa [#allocation12], 0
    %25 = vsyncpa [#allocation15], 0
    %26 = vsyncpa [#allocation18], 0
    %27 = vsyncpa [#allocation21], 0
    %28 = vsyncpa [#allocation4], 0
    %s29 = scalar_lea.sflag [#allocation4], 1
    %30 = vsyncpa %s29, 0
    loop: start=0, step=1, limit=4
    $region2: #{tpu_custom_call.1} parent=1 // loop_pre_header
      _
    $region3: #{tpu_custom_call.1} parent=1 // loop_header
      %s32 = sphi 0, %s36
      %p33 = scmp.ge.s32.totalorder %s32, 4
      %s42 = sphi 0, %s44
      %s45 = sphi 0, %s42
      %s46 = sphi 0, %s45
      %s62 = sphi 0, %s46
      %s66 = sphi 0, %s66
      %s68 = sphi 0, %s66
      %s69 = sphi 0, %s68
      %s83 = sphi 0, %s69
      %s87 = sphi 0, %s87
      %s89 = sphi 0, %s87
      %s90 = sphi 0, %s89
      %s104 = sphi 0, %s90
      %s108 = sphi 0, %s108
      %s110 = sphi 0, %s108
      %s111 = sphi 0, %s110
      %s125 = sphi 0, %s111
      %s129 = sphi 0, %s129
      %s131 = sphi 0, %s129
      %s132 = sphi 0, %s131
      %s146 = sphi 0, %s132
      %s150 = sphi 0, %s150
      %s152 = sphi 0, %s150
      %s153 = sphi 0, %s152
      %s167 = sphi 0, %s153
      %s171 = sphi 0, %s171
      %s173 = sphi 0, %s171
      %s174 = sphi 0, %s173
      %s188 = sphi 0, %s174
      %s192 = sphi 0, %s192
      %s194 = sphi 0, %s192
      %s195 = sphi 0, %s194
      %s209 = sphi 0, %s195
      %s213 = sphi 0, %s213
      %s215 = sphi 0, %s213
      %s216 = sphi 0, %s215
      %s230 = sphi 0, %s216
      %s234 = sphi 0, %s234
      %s236 = sphi 0, %s234
      %s237 = sphi 0, %s236
      %s251 = sphi 0, %s237
      %s255 = sphi 0, %s255
      %s257 = sphi 0, %s255
      %s258 = sphi 0, %s257
      %s272 = sphi 0, %s258
      %s276 = sphi 0, %s276
      %s278 = sphi 0, %s276
      %s279 = sphi 0, %s278
      %s293 = sphi 0, %s279
      %s297 = sphi 0, %s297
      %s299 = sphi 0, %s297
      %s300 = sphi 0, %s299
      %s314 = sphi 0, %s300
      %s318 = sphi 0, %s318
      %s320 = sphi 0, %s318
      %s321 = sphi 0, %s320
      %s335 = sphi 0, %s321
      %s341 = sphi 0, %s343
      %s344 = sphi 0, %s341
      %s345 = sphi 0, %s344
      %s361 = sphi 0, %s345
      %s367 = sphi 0, %s369
      %s370 = sphi 0, %s367
      %s371 = sphi 0, %s370
      %s387 = sphi 0, %s371
      %s393 = sphi 0, %s395
      %s396 = sphi 0, %s393
      %s397 = sphi 0, %s396
      %s413 = sphi 0, %s397
    $region4: #{tpu_custom_call.1} parent=1 // loop_header_branch
      %35 = sbr.rel (%p33) target = $region8
    $region5: #{tpu_custom_call.1} parent=1 // loop_body
      %s37 = ssub.s32 %s32, 1
      %s38 = ssub.s32 %s32, 2
      %s39 = sadd.s32 %s32, 1
      %s40 = ssub.s32 %s32, %s39
      %p41 = scmp.eq.s32.totalorder %s40, 0
      %s43 = sadd.s32 %s42, 1
      %s44 = scalar_select %p41, %s42, %s43
      %p47 = pneg %p41
      %p48 = scmp.eq.s32.totalorder %s32, 1
      %p49 = por %p47, %p48
      %p50 = scmp.ne.s32.totalorder %s42, %s45
      %p51 = scmp.eq.s32.totalorder %s32, 0
      %p52 = por %p50, %p51
      %p53 = scmp.ne.s32.totalorder %s42, %s45
      %p54 = scmp.eq.s32.totalorder %s37, 1
      %p55 = por %p53, %p54
      %p56 = scmp.ne.s32.totalorder %s45, %s46
      %p57 = scmp.eq.s32.totalorder %s37, 0
      %p58 = por %p56, %p57
      %p59 = scmp.ne.s32.totalorder %s45, %s46
      %p60 = scmp.eq.s32.totalorder %s38, 1
      %p61 = por %p59, %p60
      %p63 = scmp.ne.s32.totalorder %s46, %s62
      %p64 = scmp.eq.s32.totalorder %s38, 0
      %p65 = por %p63, %p64
      %s67 = sadd.s32 %s66, 1
      %p70 = scmp.eq.s32.totalorder %s32, 1
      %p71 = scmp.ne.s32.totalorder %s66, %s68
      %p72 = scmp.eq.s32.totalorder %s32, 0
      %p73 = por %p71, %p72
      %p74 = scmp.ne.s32.totalorder %s66, %s68
      %p75 = scmp.eq.s32.totalorder %s37, 1
      %p76 = por %p74, %p75
      %p77 = scmp.ne.s32.totalorder %s68, %s69
      %p78 = scmp.eq.s32.totalorder %s37, 0
      %p79 = por %p77, %p78
      %p80 = scmp.ne.s32.totalorder %s68, %s69
      %p81 = scmp.eq.s32.totalorder %s38, 1
      %p82 = por %p80, %p81
      %p84 = scmp.ne.s32.totalorder %s69, %s83
      %p85 = scmp.eq.s32.totalorder %s38, 0
      %p86 = por %p84, %p85
      %s88 = sadd.s32 %s87, 1
      %p91 = scmp.eq.s32.totalorder %s32, 1
      %p92 = scmp.ne.s32.totalorder %s87, %s89
      %p93 = scmp.eq.s32.totalorder %s32, 0
      %p94 = por %p92, %p93
      %p95 = scmp.ne.s32.totalorder %s87, %s89
      %p96 = scmp.eq.s32.totalorder %s37, 1
      %p97 = por %p95, %p96
      %p98 = scmp.ne.s32.totalorder %s89, %s90
      %p99 = scmp.eq.s32.totalorder %s37, 0
      %p100 = por %p98, %p99
      %p101 = scmp.ne.s32.totalorder %s89, %s90
      %p102 = scmp.eq.s32.totalorder %s38, 1
      %p103 = por %p101, %p102
      %p105 = scmp.ne.s32.totalorder %s90, %s104
      %p106 = scmp.eq.s32.totalorder %s38, 0
      %p107 = por %p105, %p106
      %s109 = sadd.s32 %s108, 1
      %p112 = scmp.eq.s32.totalorder %s32, 1
      %p113 = scmp.ne.s32.totalorder %s108, %s110
      %p114 = scmp.eq.s32.totalorder %s32, 0
      %p115 = por %p113, %p114
      %p116 = scmp.ne.s32.totalorder %s108, %s110
      %p117 = scmp.eq.s32.totalorder %s37, 1
      %p118 = por %p116, %p117
      %p119 = scmp.ne.s32.totalorder %s110, %s111
      %p120 = scmp.eq.s32.totalorder %s37, 0
      %p121 = por %p119, %p120
      %p122 = scmp.ne.s32.totalorder %s110, %s111
      %p123 = scmp.eq.s32.totalorder %s38, 1
      %p124 = por %p122, %p123
      %p126 = scmp.ne.s32.totalorder %s111, %s125
      %p127 = scmp.eq.s32.totalorder %s38, 0
      %p128 = por %p126, %p127
      %s130 = sadd.s32 %s129, 1
      %p133 = scmp.eq.s32.totalorder %s32, 1
      %p134 = scmp.ne.s32.totalorder %s129, %s131
      %p135 = scmp.eq.s32.totalorder %s32, 0
      %p136 = por %p134, %p135
      %p137 = scmp.ne.s32.totalorder %s129, %s131
      %p138 = scmp.eq.s32.totalorder %s37, 1
      %p139 = por %p137, %p138
      %p140 = scmp.ne.s32.totalorder %s131, %s132
      %p141 = scmp.eq.s32.totalorder %s37, 0
      %p142 = por %p140, %p141
      %p143 = scmp.ne.s32.totalorder %s131, %s132
      %p144 = scmp.eq.s32.totalorder %s38, 1
      %p145 = por %p143, %p144
      %p147 = scmp.ne.s32.totalorder %s132, %s146
      %p148 = scmp.eq.s32.totalorder %s38, 0
      %p149 = por %p147, %p148
      %s151 = sadd.s32 %s150, 1
      %p154 = scmp.eq.s32.totalorder %s32, 1
      %p155 = scmp.ne.s32.totalorder %s150, %s152
      %p156 = scmp.eq.s32.totalorder %s32, 0
      %p157 = por %p155, %p156
      %p158 = scmp.ne.s32.totalorder %s150, %s152
      %p159 = scmp.eq.s32.totalorder %s37, 1
      %p160 = por %p158, %p159
      %p161 = scmp.ne.s32.totalorder %s152, %s153
      %p162 = scmp.eq.s32.totalorder %s37, 0
      %p163 = por %p161, %p162
      %p164 = scmp.ne.s32.totalorder %s152, %s153
      %p165 = scmp.eq.s32.totalorder %s38, 1
      %p166 = por %p164, %p165
      %p168 = scmp.ne.s32.totalorder %s153, %s167
      %p169 = scmp.eq.s32.totalorder %s38, 0
      %p170 = por %p168, %p169
      %s172 = sadd.s32 %s171, 1
      %p175 = scmp.eq.s32.totalorder %s32, 1
      %p176 = scmp.ne.s32.totalorder %s171, %s173
      %p177 = scmp.eq.s32.totalorder %s32, 0
      %p178 = por %p176, %p177
      %p179 = scmp.ne.s32.totalorder %s171, %s173
      %p180 = scmp.eq.s32.totalorder %s37, 1
      %p181 = por %p179, %p180
      %p182 = scmp.ne.s32.totalorder %s173, %s174
      %p183 = scmp.eq.s32.totalorder %s37, 0
      %p184 = por %p182, %p183
      %p185 = scmp.ne.s32.totalorder %s173, %s174
      %p186 = scmp.eq.s32.totalorder %s38, 1
      %p187 = por %p185, %p186
      %p189 = scmp.ne.s32.totalorder %s174, %s188
      %p190 = scmp.eq.s32.totalorder %s38, 0
      %p191 = por %p189, %p190
      %s193 = sadd.s32 %s192, 1
      %p196 = scmp.eq.s32.totalorder %s32, 1
      %p197 = scmp.ne.s32.totalorder %s192, %s194
      %p198 = scmp.eq.s32.totalorder %s32, 0
      %p199 = por %p197, %p198
      %p200 = scmp.ne.s32.totalorder %s192, %s194
      %p201 = scmp.eq.s32.totalorder %s37, 1
      %p202 = por %p200, %p201
      %p203 = scmp.ne.s32.totalorder %s194, %s195
      %p204 = scmp.eq.s32.totalorder %s37, 0
      %p205 = por %p203, %p204
      %p206 = scmp.ne.s32.totalorder %s194, %s195
      %p207 = scmp.eq.s32.totalorder %s38, 1
      %p208 = por %p206, %p207
      %p210 = scmp.ne.s32.totalorder %s195, %s209
      %p211 = scmp.eq.s32.totalorder %s38, 0
      %p212 = por %p210, %p211
      %s214 = sadd.s32 %s213, 1
      %p217 = scmp.eq.s32.totalorder %s32, 1
      %p218 = scmp.ne.s32.totalorder %s213, %s215
      %p219 = scmp.eq.s32.totalorder %s32, 0
      %p220 = por %p218, %p219
      %p221 = scmp.ne.s32.totalorder %s213, %s215
      %p222 = scmp.eq.s32.totalorder %s37, 1
      %p223 = por %p221, %p222
      %p224 = scmp.ne.s32.totalorder %s215, %s216
      %p225 = scmp.eq.s32.totalorder %s37, 0
      %p226 = por %p224, %p225
      %p227 = scmp.ne.s32.totalorder %s215, %s216
      %p228 = scmp.eq.s32.totalorder %s38, 1
      %p229 = por %p227, %p228
      %p231 = scmp.ne.s32.totalorder %s216, %s230
      %p232 = scmp.eq.s32.totalorder %s38, 0
      %p233 = por %p231, %p232
      %s235 = sadd.s32 %s234, 1
      %p238 = scmp.eq.s32.totalorder %s32, 1
      %p239 = scmp.ne.s32.totalorder %s234, %s236
      %p240 = scmp.eq.s32.totalorder %s32, 0
      %p241 = por %p239, %p240
      %p242 = scmp.ne.s32.totalorder %s234, %s236
      %p243 = scmp.eq.s32.totalorder %s37, 1
      %p244 = por %p242, %p243
      %p245 = scmp.ne.s32.totalorder %s236, %s237
      %p246 = scmp.eq.s32.totalorder %s37, 0
      %p247 = por %p245, %p246
      %p248 = scmp.ne.s32.totalorder %s236, %s237
      %p249 = scmp.eq.s32.totalorder %s38, 1
      %p250 = por %p248, %p249
      %p252 = scmp.ne.s32.totalorder %s237, %s251
      %p253 = scmp.eq.s32.totalorder %s38, 0
      %p254 = por %p252, %p253
      %s256 = sadd.s32 %s255, 1
      %p259 = scmp.eq.s32.totalorder %s32, 1
      %p260 = scmp.ne.s32.totalorder %s255, %s257
      %p261 = scmp.eq.s32.totalorder %s32, 0
      %p262 = por %p260, %p261
      %p263 = scmp.ne.s32.totalorder %s255, %s257
      %p264 = scmp.eq.s32.totalorder %s37, 1
      %p265 = por %p263, %p264
      %p266 = scmp.ne.s32.totalorder %s257, %s258
      %p267 = scmp.eq.s32.totalorder %s37, 0
      %p268 = por %p266, %p267
      %p269 = scmp.ne.s32.totalorder %s257, %s258
      %p270 = scmp.eq.s32.totalorder %s38, 1
      %p271 = por %p269, %p270
      %p273 = scmp.ne.s32.totalorder %s258, %s272
      %p274 = scmp.eq.s32.totalorder %s38, 0
      %p275 = por %p273, %p274
      %s277 = sadd.s32 %s276, 1
      %p280 = scmp.eq.s32.totalorder %s32, 1
      %p281 = scmp.ne.s32.totalorder %s276, %s278
      %p282 = scmp.eq.s32.totalorder %s32, 0
      %p283 = por %p281, %p282
      %p284 = scmp.ne.s32.totalorder %s276, %s278
      %p285 = scmp.eq.s32.totalorder %s37, 1
      %p286 = por %p284, %p285
      %p287 = scmp.ne.s32.totalorder %s278, %s279
      %p288 = scmp.eq.s32.totalorder %s37, 0
      %p289 = por %p287, %p288
      %p290 = scmp.ne.s32.totalorder %s278, %s279
      %p291 = scmp.eq.s32.totalorder %s38, 1
      %p292 = por %p290, %p291
      %p294 = scmp.ne.s32.totalorder %s279, %s293
      %p295 = scmp.eq.s32.totalorder %s38, 0
      %p296 = por %p294, %p295
      %s298 = sadd.s32 %s297, 1
      %p301 = scmp.eq.s32.totalorder %s32, 1
      %p302 = scmp.ne.s32.totalorder %s297, %s299
      %p303 = scmp.eq.s32.totalorder %s32, 0
      %p304 = por %p302, %p303
      %p305 = scmp.ne.s32.totalorder %s297, %s299
      %p306 = scmp.eq.s32.totalorder %s37, 1
      %p307 = por %p305, %p306
      %p308 = scmp.ne.s32.totalorder %s299, %s300
      %p309 = scmp.eq.s32.totalorder %s37, 0
      %p310 = por %p308, %p309
      %p311 = scmp.ne.s32.totalorder %s299, %s300
      %p312 = scmp.eq.s32.totalorder %s38, 1
      %p313 = por %p311, %p312
      %p315 = scmp.ne.s32.totalorder %s300, %s314
      %p316 = scmp.eq.s32.totalorder %s38, 0
      %p317 = por %p315, %p316
      %s319 = sadd.s32 %s318, 1
      %p322 = scmp.eq.s32.totalorder %s32, 1
      %p323 = scmp.ne.s32.totalorder %s318, %s320
      %p324 = scmp.eq.s32.totalorder %s32, 0
      %p325 = por %p323, %p324
      %p326 = scmp.ne.s32.totalorder %s318, %s320
      %p327 = scmp.eq.s32.totalorder %s37, 1
      %p328 = por %p326, %p327
      %p329 = scmp.ne.s32.totalorder %s320, %s321
      %p330 = scmp.eq.s32.totalorder %s37, 0
      %p331 = por %p329, %p330
      %p332 = scmp.ne.s32.totalorder %s320, %s321
      %p333 = scmp.eq.s32.totalorder %s38, 1
      %p334 = por %p332, %p333
      %p336 = scmp.ne.s32.totalorder %s321, %s335
      %p337 = scmp.eq.s32.totalorder %s38, 0
      %p338 = por %p336, %p337
      %s339 = ssub.s32 %s32, %s39
      %p340 = scmp.eq.s32.totalorder %s339, 0
      %s342 = sadd.s32 %s341, 1
      %s343 = scalar_select %p340, %s341, %s342
      %p346 = pneg %p340
      %p347 = scmp.eq.s32.totalorder %s32, 1
      %p348 = por %p346, %p347
      %p349 = scmp.ne.s32.totalorder %s341, %s344
      %p350 = scmp.eq.s32.totalorder %s32, 0
      %p351 = por %p349, %p350
      %p352 = scmp.ne.s32.totalorder %s341, %s344
      %p353 = scmp.eq.s32.totalorder %s37, 1
      %p354 = por %p352, %p353
      %p355 = scmp.ne.s32.totalorder %s344, %s345
      %p356 = scmp.eq.s32.totalorder %s37, 0
      %p357 = por %p355, %p356
      %p358 = scmp.ne.s32.totalorder %s344, %s345
      %p359 = scmp.eq.s32.totalorder %s38, 1
      %p360 = por %p358, %p359
      %p362 = scmp.ne.s32.totalorder %s345, %s361
      %p363 = scmp.eq.s32.totalorder %s38, 0
      %p364 = por %p362, %p363
      %s365 = ssub.s32 %s32, %s39
      %p366 = scmp.eq.s32.totalorder %s365, 0
      %s368 = sadd.s32 %s367, 1
      %s369 = scalar_select %p366, %s367, %s368
      %p372 = pneg %p366
      %p373 = scmp.eq.s32.totalorder %s32, 1
      %p374 = por %p372, %p373
      %p375 = scmp.ne.s32.totalorder %s367, %s370
      %p376 = scmp.eq.s32.totalorder %s32, 0
      %p377 = por %p375, %p376
      %p378 = scmp.ne.s32.totalorder %s367, %s370
      %p379 = scmp.eq.s32.totalorder %s37, 1
      %p380 = por %p378, %p379
      %p381 = scmp.ne.s32.totalorder %s370, %s371
      %p382 = scmp.eq.s32.totalorder %s37, 0
      %p383 = por %p381, %p382
      %p384 = scmp.ne.s32.totalorder %s370, %s371
      %p385 = scmp.eq.s32.totalorder %s38, 1
      %p386 = por %p384, %p385
      %p388 = scmp.ne.s32.totalorder %s371, %s387
      %p389 = scmp.eq.s32.totalorder %s38, 0
      %p390 = por %p388, %p389
      %s391 = ssub.s32 %s32, %s39
      %p392 = scmp.eq.s32.totalorder %s391, 0
      %s394 = sadd.s32 %s393, 1
      %s395 = scalar_select %p392, %s393, %s394
      %p398 = pneg %p392
      %p399 = scmp.eq.s32.totalorder %s32, 1
      %p400 = por %p398, %p399
      %p401 = scmp.ne.s32.totalorder %s393, %s396
      %p402 = scmp.eq.s32.totalorder %s32, 0
      %p403 = por %p401, %p402
      %p404 = scmp.ne.s32.totalorder %s393, %s396
      %p405 = scmp.eq.s32.totalorder %s37, 1
      %p406 = por %p404, %p405
      %p407 = scmp.ne.s32.totalorder %s396, %s397
      %p408 = scmp.eq.s32.totalorder %s37, 0
      %p409 = por %p407, %p408
      %p410 = scmp.ne.s32.totalorder %s396, %s397
      %p411 = scmp.eq.s32.totalorder %s38, 1
      %p412 = por %p410, %p411
      %p414 = scmp.ne.s32.totalorder %s397, %s413
      %p415 = scmp.eq.s32.totalorder %s38, 0
      %p416 = por %p414, %p415
      %p417 = scmp.le.s32.totalorder 1, %s32
      %p418 = scmp.lt.s32.totalorder %s32, 3
      %p419 = pnand %p417, %p418
      %p420 = pneg %p419
      // Predicated region
      $region9: #{tpu_custom_call.1} parent=5 // pred_check
        _
      $region10: #{tpu_custom_call.1} parent=5 // pred_check_branch
        %422 = sbr.rel (%p419) target = $region12
      $region11: #{tpu_custom_call.1} parent=5 // pred_region
        %s423 = ssub.s32 %s32, 1
        // Predicated region
        $region13: #{tpu_custom_call.1} parent=11 // pred_check
          %p424 = pneg %p79
        $region14: #{tpu_custom_call.1} parent=11 // pred_check_branch
          %426 = sbr.rel (%p424) target = $region16
        $region15: #{tpu_custom_call.1} parent=11 // pred_region
          %s428 = ssub.s32 32, 32
          %429 = vsyncadd [#allocation3], %s428
          %s431 = sshll.u32 [#allocation2], 4
          %s432 = int_to_ptr.vmem [resolvable:$true] %s431
          %434 = dma.hbm_to_vmem [thread:$0]  %s1, 32, %s432, [#allocation3]
        $region16: #{tpu_custom_call.1} parent=11 // pred_fallthru
          _
        // Predicated region
        $region17: #{tpu_custom_call.1} parent=11 // pred_check
          %p435 = pneg %p100
        $region18: #{tpu_custom_call.1} parent=11 // pred_check_branch
          %437 = sbr.rel (%p435) target = $region20
        $region19: #{tpu_custom_call.1} parent=11 // pred_region
          _
        $region20: #{tpu_custom_call.1} parent=11 // pred_fallthru
          _
        // Predicated region
        $region21: #{tpu_custom_call.1} parent=11 // pred_check
          %p438 = pneg %p121
        $region22: #{tpu_custom_call.1} parent=11 // pred_check_branch
          %440 = sbr.rel (%p438) target = $region24
        $region23: #{tpu_custom_call.1} parent=11 // pred_region
          %s442 = ssub.s32 1024, 1024
          %443 = vsyncadd [#allocation6], %s442
          %s444 = sshll.u32 [#allocation5], 4
          %s445 = int_to_ptr.vmem [resolvable:$true] %s444
          %450 = dma.hbm_to_vmem [thread:$0]  %s3, 1024, %s445, [#allocation6], 256, 256, 16
        $region24: #{tpu_custom_call.1} parent=11 // pred_fallthru
          _
        // Predicated region
        $region25: #{tpu_custom_call.1} parent=11 // pred_check
          %p451 = pneg %p142
        $region26: #{tpu_custom_call.1} parent=11 // pred_check_branch
          %453 = sbr.rel (%p451) target = $region28
        $region27: #{tpu_custom_call.1} parent=11 // pred_region
          %s455 = ssub.s32 32, 32
          %456 = vsyncadd [#allocation6], %s455
          %s458 = sshll.u32 [#allocation7], 4
          %s459 = int_to_ptr.vmem [resolvable:$true] %s458
          %461 = dma.hbm_to_vmem [thread:$0]  %s4, 32, %s459, [#allocation6]
        $region28: #{tpu_custom_call.1} parent=11 // pred_fallthru
          _
        // Predicated region
        $region29: #{tpu_custom_call.1} parent=11 // pred_check
          %p462 = pneg %p163
        $region30: #{tpu_custom_call.1} parent=11 // pred_check_branch
          %464 = sbr.rel (%p462) target = $region32
        $region31: #{tpu_custom_call.1} parent=11 // pred_region
          %s466 = ssub.s32 32, 32
          %467 = vsyncadd [#allocation9], %s466
          %s469 = sshll.u32 [#allocation8], 4
          %s470 = int_to_ptr.vmem [resolvable:$true] %s469
          %472 = dma.hbm_to_vmem [thread:$0]  %s5, 32, %s470, [#allocation9]
        $region32: #{tpu_custom_call.1} parent=11 // pred_fallthru
          _
        // Predicated region
        $region33: #{tpu_custom_call.1} parent=11 // pred_check
          %p473 = pneg %p184
        $region34: #{tpu_custom_call.1} parent=11 // pred_check_branch
          %475 = sbr.rel (%p473) target = $region36
        $region35: #{tpu_custom_call.1} parent=11 // pred_region
          %s477 = ssub.s32 32, 32
          %478 = vsyncadd [#allocation9], %s477
          %s480 = sshll.u32 [#allocation10], 4
          %s481 = int_to_ptr.vmem [resolvable:$true] %s480
          %483 = dma.hbm_to_vmem [thread:$0]  %s6, 32, %s481, [#allocation9]
        $region36: #{tpu_custom_call.1} parent=11 // pred_fallthru
          _
        // Predicated region
        $region37: #{tpu_custom_call.1} parent=11 // pred_check
          %p484 = pneg %p205
        $region38: #{tpu_custom_call.1} parent=11 // pred_check_branch
          %486 = sbr.rel (%p484) target = $region40
        $region39: #{tpu_custom_call.1} parent=11 // pred_region
          %s488 = ssub.s32 32, 32
          %489 = vsyncadd [#allocation12], %s488
          %s491 = sshll.u32 [#allocation11], 4
          %s492 = int_to_ptr.vmem [resolvable:$true] %s491
          %494 = dma.hbm_to_vmem [thread:$0]  %s7, 32, %s492, [#allocation12]
        $region40: #{tpu_custom_call.1} parent=11 // pred_fallthru
          _
        // Predicated region
        $region41: #{tpu_custom_call.1} parent=11 // pred_check
          %p495 = pneg %p226
        $region42: #{tpu_custom_call.1} parent=11 // pred_check_branch
          %497 = sbr.rel (%p495) target = $region44
        $region43: #{tpu_custom_call.1} parent=11 // pred_region
          %s499 = ssub.s32 4096, 4096
          %500 = vsyncadd [#allocation12], %s499
          %s501 = sshll.u32 [#allocation13], 4
          %s502 = int_to_ptr.vmem [resolvable:$true] %s501
          %507 = dma.hbm_to_vmem [thread:$0]  %s8, 4096, %s502, [#allocation12], 128, 128, 8
        $region44: #{tpu_custom_call.1} parent=11 // pred_fallthru
          _
        // Predicated region
        $region45: #{tpu_custom_call.1} parent=11 // pred_check
          %p508 = pneg %p247
        $region46: #{tpu_custom_call.1} parent=11 // pred_check_branch
          %510 = sbr.rel (%p508) target = $region48
        $region47: #{tpu_custom_call.1} parent=11 // pred_region
          %s512 = ssub.s32 16, 16
          %513 = vsyncadd [#allocation15], %s512
          %s515 = sshll.u32 [#allocation14], 4
          %s516 = int_to_ptr.vmem [resolvable:$true] %s515
          %518 = dma.hbm_to_vmem [thread:$0]  %s9, 16, %s516, [#allocation15]
        $region48: #{tpu_custom_call.1} parent=11 // pred_fallthru
          _
        // Predicated region
        $region49: #{tpu_custom_call.1} parent=11 // pred_check
          %p519 = pneg %p268
        $region50: #{tpu_custom_call.1} parent=11 // pred_check_branch
          %521 = sbr.rel (%p519) target = $region52
        $region51: #{tpu_custom_call.1} parent=11 // pred_region
          %s523 = ssub.s32 16, 16
          %524 = vsyncadd [#allocation15], %s523
          %s526 = sshll.u32 [#allocation16], 4
          %s527 = int_to_ptr.vmem [resolvable:$true] %s526
          %529 = dma.hbm_to_vmem [thread:$0]  %s10, 16, %s527, [#allocation15]
        $region52: #{tpu_custom_call.1} parent=11 // pred_fallthru
          _
        // Predicated region
        $region53: #{tpu_custom_call.1} parent=11 // pred_check
          %p530 = pneg %p289
        $region54: #{tpu_custom_call.1} parent=11 // pred_check_branch
          %532 = sbr.rel (%p530) target = $region56
        $region55: #{tpu_custom_call.1} parent=11 // pred_region
          %s534 = ssub.s32 16, 16
          %535 = vsyncadd [#allocation18], %s534
          %s537 = sshll.u32 [#allocation17], 4
          %s538 = int_to_ptr.vmem [resolvable:$true] %s537
          %540 = dma.hbm_to_vmem [thread:$0]  %s11, 16, %s538, [#allocation18]
        $region56: #{tpu_custom_call.1} parent=11 // pred_fallthru
          _
        // Predicated region
        $region57: #{tpu_custom_call.1} parent=11 // pred_check
          %p541 = pneg %p310
        $region58: #{tpu_custom_call.1} parent=11 // pred_check_branch
          %543 = sbr.rel (%p541) target = $region60
        $region59: #{tpu_custom_call.1} parent=11 // pred_region
          %s545 = ssub.s32 2048, 2048
          %546 = vsyncadd [#allocation18], %s545
          %s547 = sshll.u32 [#allocation19], 4
          %s548 = int_to_ptr.vmem [resolvable:$true] %s547
          %553 = dma.hbm_to_vmem [thread:$0]  %s12, 2048, %s548, [#allocation18], 128, 128, 8
        $region60: #{tpu_custom_call.1} parent=11 // pred_fallthru
          _
        // Predicated region
        $region61: #{tpu_custom_call.1} parent=11 // pred_check
          %p554 = pneg %p331
        $region62: #{tpu_custom_call.1} parent=11 // pred_check_branch
          %556 = sbr.rel (%p554) target = $region64
        $region63: #{tpu_custom_call.1} parent=11 // pred_region
          %s558 = ssub.s32 16, 16
          %559 = vsyncadd [#allocation21], %s558
          %s561 = sshll.u32 [#allocation20], 4
          %s562 = int_to_ptr.vmem [resolvable:$true] %s561
          %564 = dma.hbm_to_vmem [thread:$0]  %s13, 16, %s562, [#allocation21]
        $region64: #{tpu_custom_call.1} parent=11 // pred_fallthru
          _
      $region12: #{tpu_custom_call.1} parent=5 // pred_fallthru
        _
      %p565 = scmp.lt.s32.totalorder %s32, 2
      // Predicated region
      $region65: #{tpu_custom_call.1} parent=5 // pred_check
        %p566 = pneg %p565
      $region66: #{tpu_custom_call.1} parent=5 // pred_check_branch
        %568 = sbr.rel (%p566) target = $region68
      $region67: #{tpu_custom_call.1} parent=5 // pred_region
        // Predicated region
        $region69: #{tpu_custom_call.1} parent=67 // pred_check
          %p569 = pneg %p52
        $region70: #{tpu_custom_call.1} parent=67 // pred_check_branch
          %571 = sbr.rel (%p569) target = $region72
        $region71: #{tpu_custom_call.1} parent=67 // pred_region
          %s572 = smul.u32 2, %s32
          %s573 = ssub.s32 3, %s572
          %p574 = scmp.lt.s32.totalorder %s573, 2
          %s575 = scalar_select %p574, %s573, 2
          %s576 = smul.u32 128, %s575
          %p577 = scmp.lt.s32.totalorder %s572, 2
          %s578 = scalar_select %p577, %s572, 2
          %s579 = smul.addr %s578, 8
          %s580 = scalar_lea.vmem %s0, %s579
          %s581 = smul.u32 2, %s32
          %s582 = ssub.s32 3, %s581
          %p583 = scmp.lt.s32.totalorder %s582, 2
          %s584 = scalar_select %p583, %s582, 2
          %s585 = smul.u32 128, %s584
        $region72: #{tpu_custom_call.1} parent=67 // pred_fallthru
          _
        // Predicated region
        $region73: #{tpu_custom_call.1} parent=67 // pred_check
          %p586 = pneg %p351
        $region74: #{tpu_custom_call.1} parent=67 // pred_check_branch
          %588 = sbr.rel (%p586) target = $region76
        $region75: #{tpu_custom_call.1} parent=67 // pred_region
          %s589 = smul.u32 2, %s32
          %s590 = ssub.s32 3, %s589
          %p591 = scmp.lt.s32.totalorder %s590, 2
          %s592 = scalar_select %p591, %s590, 2
          %s593 = smul.u32 128, %s592
          %p594 = scmp.lt.s32.totalorder %s589, 2
          %s595 = scalar_select %p594, %s589, 2
          %s596 = smul.addr %s595, 8
          %s597 = scalar_lea.vmem %s14, %s596
          %s598 = smul.u32 2, %s32
          %s599 = ssub.s32 3, %s598
          %p600 = scmp.lt.s32.totalorder %s599, 2
          %s601 = scalar_select %p600, %s599, 2
          %s602 = smul.u32 128, %s601
        $region76: #{tpu_custom_call.1} parent=67 // pred_fallthru
          _
        // Predicated region
        $region77: #{tpu_custom_call.1} parent=67 // pred_check
          %p603 = pneg %p377
        $region78: #{tpu_custom_call.1} parent=67 // pred_check_branch
          %605 = sbr.rel (%p603) target = $region80
        $region79: #{tpu_custom_call.1} parent=67 // pred_region
          %s606 = smul.u32 2, %s32
          %s607 = ssub.s32 3, %s606
          %p608 = scmp.lt.s32.totalorder %s607, 2
          %s609 = scalar_select %p608, %s607, 2
          %s610 = smul.u32 128, %s609
          %p611 = scmp.lt.s32.totalorder %s606, 2
          %s612 = scalar_select %p611, %s606, 2
          %s613 = smul.addr %s612, 8
          %s614 = scalar_lea.vmem %s15, %s613
          %s615 = smul.u32 2, %s32
          %s616 = ssub.s32 3, %s615
          %p617 = scmp.lt.s32.totalorder %s616, 2
          %s618 = scalar_select %p617, %s616, 2
          %s619 = smul.u32 128, %s618
        $region80: #{tpu_custom_call.1} parent=67 // pred_fallthru
          _
      $region68: #{tpu_custom_call.1} parent=5 // pred_fallthru
        _
      %p620 = scmp.le.s32.totalorder 1, %s32
      %p621 = scmp.lt.s32.totalorder %s32, 3
      %p622 = pnand %p620, %p621
      %p623 = pneg %p622
      // Predicated region
      $region81: #{tpu_custom_call.1} parent=5 // pred_check
        _
      $region82: #{tpu_custom_call.1} parent=5 // pred_check_branch
        %625 = sbr.rel (%p622) target = $region84
      $region83: #{tpu_custom_call.1} parent=5 // pred_region
        %s626 = ssub.s32 %s32, 1
        // Predicated region
        $region85: #{tpu_custom_call.1} parent=83 // pred_check
          %p627 = pneg %p79
        $region86: #{tpu_custom_call.1} parent=83 // pred_check_branch
          %629 = sbr.rel (%p627) target = $region88
        $region87: #{tpu_custom_call.1} parent=83 // pred_region
          %630 = dma.done [#allocation3], 32
        $region88: #{tpu_custom_call.1} parent=83 // pred_fallthru
          _
        // Predicated region
        $region89: #{tpu_custom_call.1} parent=83 // pred_check
          %p631 = pneg %p121
        $region90: #{tpu_custom_call.1} parent=83 // pred_check_branch
          %633 = sbr.rel (%p631) target = $region92
        $region91: #{tpu_custom_call.1} parent=83 // pred_region
          %634 = dma.done [#allocation6], 1024
        $region92: #{tpu_custom_call.1} parent=83 // pred_fallthru
          _
        // Predicated region
        $region93: #{tpu_custom_call.1} parent=83 // pred_check
          %p635 = pneg %p142
        $region94: #{tpu_custom_call.1} parent=83 // pred_check_branch
          %637 = sbr.rel (%p635) target = $region96
        $region95: #{tpu_custom_call.1} parent=83 // pred_region
          %638 = dma.done [#allocation6], 32
        $region96: #{tpu_custom_call.1} parent=83 // pred_fallthru
          _
        // Predicated region
        $region97: #{tpu_custom_call.1} parent=83 // pred_check
          %p639 = pneg %p163
        $region98: #{tpu_custom_call.1} parent=83 // pred_check_branch
          %641 = sbr.rel (%p639) target = $region100
        $region99: #{tpu_custom_call.1} parent=83 // pred_region
          %642 = dma.done [#allocation9], 32
        $region100: #{tpu_custom_call.1} parent=83 // pred_fallthru
          _
        // Predicated region
        $region101: #{tpu_custom_call.1} parent=83 // pred_check
          %p643 = pneg %p184
        $region102: #{tpu_custom_call.1} parent=83 // pred_check_branch
          %645 = sbr.rel (%p643) target = $region104
        $region103: #{tpu_custom_call.1} parent=83 // pred_region
          %646 = dma.done [#allocation9], 32
        $region104: #{tpu_custom_call.1} parent=83 // pred_fallthru
          _
        // Predicated region
        $region105: #{tpu_custom_call.1} parent=83 // pred_check
          %p647 = pneg %p205
        $region106: #{tpu_custom_call.1} parent=83 // pred_check_branch
          %649 = sbr.rel (%p647) target = $region108
        $region107: #{tpu_custom_call.1} parent=83 // pred_region
          %650 = dma.done [#allocation12], 32
        $region108: #{tpu_custom_call.1} parent=83 // pred_fallthru
          _
        // Predicated region
        $region109: #{tpu_custom_call.1} parent=83 // pred_check
          %p651 = pneg %p226
        $region110: #{tpu_custom_call.1} parent=83 // pred_check_branch
          %653 = sbr.rel (%p651) target = $region112
        $region111: #{tpu_custom_call.1} parent=83 // pred_region
          %654 = dma.done [#allocation12], 4096
        $region112: #{tpu_custom_call.1} parent=83 // pred_fallthru
          _
        // Predicated region
        $region113: #{tpu_custom_call.1} parent=83 // pred_check
          %p655 = pneg %p247
        $region114: #{tpu_custom_call.1} parent=83 // pred_check_branch
          %657 = sbr.rel (%p655) target = $region116
        $region115: #{tpu_custom_call.1} parent=83 // pred_region
          %658 = dma.done [#allocation15], 16
        $region116: #{tpu_custom_call.1} parent=83 // pred_fallthru
          _
        // Predicated region
        $region117: #{tpu_custom_call.1} parent=83 // pred_check
          %p659 = pneg %p268
        $region118: #{tpu_custom_call.1} parent=83 // pred_check_branch
          %661 = sbr.rel (%p659) target = $region120
        $region119: #{tpu_custom_call.1} parent=83 // pred_region
          %662 = dma.done [#allocation15], 16
        $region120: #{tpu_custom_call.1} parent=83 // pred_fallthru
          _
        // Predicated region
        $region121: #{tpu_custom_call.1} parent=83 // pred_check
          %p663 = pneg %p289
        $region122: #{tpu_custom_call.1} parent=83 // pred_check_branch
          %665 = sbr.rel (%p663) target = $region124
        $region123: #{tpu_custom_call.1} parent=83 // pred_region
          %666 = dma.done [#allocation18], 16
        $region124: #{tpu_custom_call.1} parent=83 // pred_fallthru
          _
        // Predicated region
        $region125: #{tpu_custom_call.1} parent=83 // pred_check
          %p667 = pneg %p310
        $region126: #{tpu_custom_call.1} parent=83 // pred_check_branch
          %669 = sbr.rel (%p667) target = $region128
        $region127: #{tpu_custom_call.1} parent=83 // pred_region
          %670 = dma.done [#allocation18], 2048
        $region128: #{tpu_custom_call.1} parent=83 // pred_fallthru
          _
        // Predicated region
        $region129: #{tpu_custom_call.1} parent=83 // pred_check
          %p671 = pneg %p331
        $region130: #{tpu_custom_call.1} parent=83 // pred_check_branch
          %673 = sbr.rel (%p671) target = $region132
        $region131: #{tpu_custom_call.1} parent=83 // pred_region
          %674 = dma.done [#allocation21], 16
        $region132: #{tpu_custom_call.1} parent=83 // pred_fallthru
          _
        %s675 = smul.u32 2, %s37
        %s676 = ssub.s32 3, %s675
        %p677 = scmp.lt.s32.totalorder %s676, 2
        %s678 = scalar_select %p677, %s676, 2
        %s679 = smul.u32 128, %s678
        %p680 = scmp.lt.s32.totalorder %s675, 2
        %s681 = scalar_select %p680, %s675, 2
        %s682 = smul.addr %s681, 8
        %s683 = scalar_lea.vmem %s0, %s682
        %p684 = pneg %p58
        %p685 = pneg %p55
        %p686 = pneg %p79
        %p687 = pneg %p76
        %p688 = pneg %p100
        %p689 = pneg %p97
        %p690 = pneg %p121
        %p691 = pneg %p118
        %p692 = pneg %p142
        %p693 = pneg %p139
        %p694 = pneg %p163
        %p695 = pneg %p160
        %p696 = pneg %p184
        %p697 = pneg %p181
        %p698 = pneg %p205
        %p699 = pneg %p202
        %p700 = pneg %p226
        %p701 = pneg %p223
        %p702 = pneg %p247
        %p703 = pneg %p244
        %p704 = pneg %p268
        %p705 = pneg %p265
        %p706 = pneg %p289
        %p707 = pneg %p286
        %p708 = pneg %p310
        %p709 = pneg %p307
        %p710 = pneg %p331
        %p711 = pneg %p328
        %s712 = smul.u32 2, %s37
        %s713 = ssub.s32 3, %s712
        %p714 = scmp.lt.s32.totalorder %s713, 2
        %s715 = scalar_select %p714, %s713, 2
        %s716 = smul.u32 128, %s715
        %p717 = scmp.lt.s32.totalorder %s712, 2
        %s718 = scalar_select %p717, %s712, 2
        %s719 = smul.addr %s718, 8
        %s720 = scalar_lea.vmem %s14, %s719
        %p721 = pneg %p357
        %p722 = pneg %p354
        %s723 = smul.u32 2, %s37
        %s724 = ssub.s32 3, %s723
        %p725 = scmp.lt.s32.totalorder %s724, 2
        %s726 = scalar_select %p725, %s724, 2
        %s727 = smul.u32 128, %s726
        %p728 = scmp.lt.s32.totalorder %s723, 2
        %s729 = scalar_select %p728, %s723, 2
        %s730 = smul.addr %s729, 8
        %s731 = scalar_lea.vmem %s15, %s730
        %p732 = pneg %p383
        %p733 = pneg %p380
        %p734 = pneg %p409
        %p735 = pneg %p406
        %s736 = sand.u32 %s396, 1
        %s737 = scalar_lea.sflag [#allocation4], %s736
        %s738 = sand.u32 %s396, 1
        %s739 = smul.addr %s738, 16
        %s740 = scalar_lea.vmem [#allocation22], %s739
        %s741 = smul.u32 2, %s37
        %s742 = ssub.s32 3, %s741
        %p743 = scmp.lt.s32.totalorder %s742, 2
        %s744 = scalar_select %p743, %s742, 2
        %s745 = smul.u32 128, %s744
        %p746 = scmp.lt.s32.totalorder %s741, 2
        %s747 = scalar_select %p746, %s741, 2
        %s748 = smul.addr %s747, 8
        %s749 = scalar_lea.vmem %s0, %s748
        %s750 = smul.u32 2, %s37
        %s751 = ssub.s32 3, %s750
        %p752 = scmp.lt.s32.totalorder %s751, 2
        %s753 = scalar_select %p752, %s751, 2
        %s754 = smul.u32 128, %s753
        %s755 = smul.u32 2, %s37
        %s756 = ssub.s32 3, %s755
        %p757 = scmp.lt.s32.totalorder %s756, 2
        %s758 = scalar_select %p757, %s756, 2
        %s759 = smul.u32 128, %s758
        %p760 = scmp.lt.s32.totalorder %s755, 2
        %s761 = scalar_select %p760, %s755, 2
        %s762 = smul.addr %s761, 8
        %s763 = scalar_lea.vmem %s14, %s762
        %s764 = smul.u32 2, %s37
        %s765 = ssub.s32 3, %s764
        %p766 = scmp.lt.s32.totalorder %s765, 2
        %s767 = scalar_select %p766, %s765, 2
        %s768 = smul.u32 128, %s767
        %s769 = smul.u32 2, %s37
        %s770 = ssub.s32 3, %s769
        %p771 = scmp.lt.s32.totalorder %s770, 2
        %s772 = scalar_select %p771, %s770, 2
        %s773 = smul.u32 128, %s772
        %p774 = scmp.lt.s32.totalorder %s769, 2
        %s775 = scalar_select %p774, %s769, 2
        %s776 = smul.addr %s775, 8
        %s777 = scalar_lea.vmem %s15, %s776
        %s778 = smul.u32 2, %s37
        %s779 = ssub.s32 3, %s778
        %p780 = scmp.lt.s32.totalorder %s779, 2
        %s781 = scalar_select %p780, %s779, 2
        %s782 = smul.u32 128, %s781
        %s783 = smul.u32 2, %s37
        %s784 = ssub.s32 3, %s783
        %p785 = scmp.lt.s32.totalorder %s784, 2
        %s786 = scalar_select %p785, %s784, 2
        %s787 = smul.u32 128, %s786
        %v788 = vld [vmem:[%s749] sm:$0xff]
        %v789 = vld [vmem:[%s749 + $0x8] sm:$0xff]
        %v790 = vld [vmem:[%s2] sm:$0x1]
        %v791 = vld [vmem:[#allocation2] sm:$0x1]
        %793 = vset.pattern.permute.xlu0 0
        %794 = vperm.xlu0 %793, %v788
        %v795 = vpop.permute.xlu0 %794
        %798 = vset.pattern.permute.xlu0 0
        %799 = vperm.xlu0 %798, %v789
        %v800 = vpop.permute.xlu0 %799
        %v802 = vlaneseq
        %v803 = vshrl.u32 %v802, 7
        %v804 = vsub.s32 0, %v803
        %v805 = vrot.slane %v791, %v804
        %v806 = vmul.f32 %v795, %v805
        %v807 = vmul.f32 %v800, %v805
        %v809 = vlaneseq
        %v810 = vshrl.u32 %v809, 7
        %v811 = vsub.s32 0, %v810
        %v812 = vrot.slane %v790, %v811
        %v814 = vadd.f32 %v812, %v806
        %v815 = vadd.f32 %v812, %v807
        %v816 = vld [vmem:[#allocation2 + $0x1] sm:$0x1]
        %817 = vset.pattern.permute.xlu0 1
        %818 = vperm.xlu0 %817, %v788
        %v819 = vpop.permute.xlu0 %818
        %821 = vset.pattern.permute.xlu0 1
        %822 = vperm.xlu0 %821, %v789
        %v823 = vpop.permute.xlu0 %822
        %v825 = vlaneseq
        %v826 = vshrl.u32 %v825, 7
        %v827 = vsub.s32 0, %v826
        %v828 = vrot.slane %v816, %v827
        %v829 = vmul.f32 %v819, %v828
        %v830 = vmul.f32 %v823, %v828
        %v831 = vadd.f32 %v814, %v829
        %v832 = vadd.f32 %v815, %v830
        %v833 = vand.u32 2147483647, %v831
        %vm834 = vcmp.le.f32.partialorder %v833, 0.7853982
        %vm835 = vcmp.lt.s32.totalorder %v831, 0
        %v836 = vand.u32 %v831, 2139095040
        %v837 = vshrl.u32 %v836, 23
        %v838 = vsub.s32 %v837, 127
        %v839 = vand.u32 2147483647, %v831
        %v840 = vand.u32 %v839, 8388607
        %v841 = vor.u32 %v840, 8388608
        %v842 = vsub.s32 0, %v841
        %v843 = vadd.s32 %v838, 1
        %vm844 = vcmp.gt.s32.totalorder %v843, 0
        %v845 = vsel %vm844, %v843, 0
        %v846 = vshrl.u32 %v845, 5
        %v847 = vand.u32 %v845, 31
        %v848 = vsub.s32 32, %v847
        %v849 = vshrl.u32 683565275, %v848
        %v850 = vshll.u32 683565275, %v847
        %v851 = vshrl.u32 2475754826, %v848
        %v852 = vor.u32 %v850, %v851
        %v853 = vshll.u32 2475754826, %v847
        %v854 = vshrl.u32 2131351028, %v848
        %v855 = vor.u32 %v853, %v854
        %v856 = vshll.u32 2131351028, %v847
        %v857 = vshrl.u32 2102212464, %v848
        %v858 = vor.u32 %v856, %v857
        %v859 = vshll.u32 2102212464, %v847
        %v860 = vshrl.u32 920167782, %v848
        %v861 = vor.u32 %v859, %v860
        %v862 = vshll.u32 920167782, %v847
        %v863 = vshrl.u32 1326507024, %v848
        %v864 = vor.u32 %v862, %v863
        %vm865 = vcmp.lt.s32.totalorder %v846, 1
        %vm866 = vcmp.lt.s32.totalorder %v846, 2
        %vm867 = vcmp.lt.s32.totalorder %v846, 3
        %vm868 = vcmp.lt.s32.totalorder %v846, 4
        %v869 = vsel %vm865, %v849, %v852
        %v870 = vsel %vm868, %v858, 2102212464
        %v871 = vsel %vm867, %v855, %v870
        %v872 = vsel %vm866, %v869, %v871
        %v873 = vsel %vm865, %v852, %v855
        %v874 = vsel %vm868, %v861, 920167782
        %v875 = vsel %vm867, %v858, %v874
        %v876 = vsel %vm866, %v873, %v875
        %v877 = vsel %vm865, %v855, %v858
        %v878 = vsel %vm868, %v864, 1326507024
        %v879 = vsel %vm867, %v861, %v878
        %v880 = vsel %vm866, %v877, %v879
        %v881 = vshll.u32 %v841, 8
        %v882 = vmul.u32.u64.compose %v881, %v880
        %v883 = vextract.low.u32 %v882
        %v884 = vextract.high.u32 %v882
        %v885 = vmul.u32.u64.compose %v881, %v876
        %v886 = vextract.low.u32 %v885
        %v887 = vextract.high.u32 %v885
        %v888 = vmul.u32 %v881, %v872
        %v889 = vadd.s32 %v884, %v886
        %vm890 = vc.u32 %v884, %v886
        %v891 = vadd.s32 %v887, 1
        %v892 = vsel %vm890, %v891, %v887
        %v893 = vadd.s32 %v888, %v892
        %v894 = vadd.s32 %v893, 536870912
        %v895 = vshrl.u32 %v894, 30
        %v896 = vshll.u32 %v895, 30
        %v897 = vsub.s32 %v893, %v896
        %vm898 = vcmp.lt.s32.totalorder %v897, 0
        %v899 = vsub.s32 0, %v897
        %v900 = vsel %vm898, %v899, %v897
        %v901 = vclz %v900
        %v902 = vsub.s32 %v901, 2
        %vm903 = vcmp.gt.s32.totalorder 0, %v902
        %v904 = vsel %vm903, 0, %v902
        %v905 = vsub.s32 32, %v904
        %v906 = vshll.u32 %v897, %v904
        %v907 = vshrl.u32 %v889, %v905
        %v908 = vor.u32 %v906, %v907
        %v909 = vsub.s32 4294967266, %v904
        %v910 = vadd.s32 %v909, 127
        %v911 = vshll.u32 %v910, 23
        %v912 = vor.u32 4788187, %v911
        %v913 = vand.u32 2147483647, %v912
        %v915 = vcvt.s32.f32 %v908
        %v916 = vmul.f32 %v915, %v913
        %v917 = vxor.u32 %v916, 2147483648
        %v918 = vsel %vm835, %v917, %v916
        %v919 = vsub.s32 4, %v895
        %v920 = vsel %vm835, %v919, %v895
        %v921 = vsel %vm834, %v831, %v918
        %v922 = vsel %vm834, 0, %v920
        %v923 = vcosq.f32.pop %v921
        %v924 = vsinq.f32.pop %v921
        %vm925 = vweird.f32 %v831
        %v926 = vand.u32 %v922, 3
        %vm927 = vcmp.lt.s32.totalorder %v926, 2
        %vm928 = vcmp.eq.s32.totalorder %v926, 0
        %v929 = vxor.u32 %v924, 2147483648
        %v930 = vsel %vm928, %v923, %v929
        %vm931 = vcmp.eq.s32.totalorder %v926, 2
        %v932 = vxor.u32 %v923, 2147483648
        %v933 = vsel %vm931, %v932, %v924
        %v934 = vsel %vm927, %v930, %v933
        %v935 = vsel %vm925, nan, %v934
        %v936 = vand.u32 2147483647, %v832
        %vm937 = vcmp.le.f32.partialorder %v936, 0.7853982
        %vm938 = vcmp.lt.s32.totalorder %v832, 0
        %v939 = vand.u32 %v832, 2139095040
        %v940 = vshrl.u32 %v939, 23
        %v941 = vsub.s32 %v940, 127
        %v942 = vand.u32 2147483647, %v832
        %v943 = vand.u32 %v942, 8388607
        %v944 = vor.u32 %v943, 8388608
        %v945 = vsub.s32 0, %v944
        %v946 = vadd.s32 %v941, 1
        %vm947 = vcmp.gt.s32.totalorder %v946, 0
        %v948 = vsel %vm947, %v946, 0
        %v949 = vshrl.u32 %v948, 5
        %v950 = vand.u32 %v948, 31
        %v951 = vsub.s32 32, %v950
        %v952 = vshrl.u32 683565275, %v951
        %v953 = vshll.u32 683565275, %v950
        %v954 = vshrl.u32 2475754826, %v951
        %v955 = vor.u32 %v953, %v954
        %v956 = vshll.u32 2475754826, %v950
        %v957 = vshrl.u32 2131351028, %v951
        %v958 = vor.u32 %v956, %v957
        %v959 = vshll.u32 2131351028, %v950
        %v960 = vshrl.u32 2102212464, %v951
        %v961 = vor.u32 %v959, %v960
        %v962 = vshll.u32 2102212464, %v950
        %v963 = vshrl.u32 920167782, %v951
        %v964 = vor.u32 %v962, %v963
        %v965 = vshll.u32 920167782, %v950
        %v966 = vshrl.u32 1326507024, %v951
        %v967 = vor.u32 %v965, %v966
        %vm968 = vcmp.lt.s32.totalorder %v949, 1
        %vm969 = vcmp.lt.s32.totalorder %v949, 2
        %vm970 = vcmp.lt.s32.totalorder %v949, 3
        %vm971 = vcmp.lt.s32.totalorder %v949, 4
        %v972 = vsel %vm968, %v952, %v955
        %v973 = vsel %vm971, %v961, 2102212464
        %v974 = vsel %vm970, %v958, %v973
        %v975 = vsel %vm969, %v972, %v974
        %v976 = vsel %vm968, %v955, %v958
        %v977 = vsel %vm971, %v964, 920167782
        %v978 = vsel %vm970, %v961, %v977
        %v979 = vsel %vm969, %v976, %v978
        %v980 = vsel %vm968, %v958, %v961
        %v981 = vsel %vm971, %v967, 1326507024
        %v982 = vsel %vm970, %v964, %v981
        %v983 = vsel %vm969, %v980, %v982
        %v984 = vshll.u32 %v944, 8
        %v985 = vmul.u32.u64.compose %v984, %v983
        %v986 = vextract.low.u32 %v985
        %v987 = vextract.high.u32 %v985
        %v988 = vmul.u32.u64.compose %v984, %v979
        %v989 = vextract.low.u32 %v988
        %v990 = vextract.high.u32 %v988
        %v991 = vmul.u32 %v984, %v975
        %v992 = vadd.s32 %v987, %v989
        %vm993 = vc.u32 %v987, %v989
        %v994 = vadd.s32 %v990, 1
        %v995 = vsel %vm993, %v994, %v990
        %v996 = vadd.s32 %v991, %v995
        %v997 = vadd.s32 %v996, 536870912
        %v998 = vshrl.u32 %v997, 30
        %v999 = vshll.u32 %v998, 30
        %v1000 = vsub.s32 %v996, %v999
        %vm1001 = vcmp.lt.s32.totalorder %v1000, 0
        %v1002 = vsub.s32 0, %v1000
        %v1003 = vsel %vm1001, %v1002, %v1000
        %v1004 = vclz %v1003
        %v1005 = vsub.s32 %v1004, 2
        %vm1006 = vcmp.gt.s32.totalorder 0, %v1005
        %v1007 = vsel %vm1006, 0, %v1005
        %v1008 = vsub.s32 32, %v1007
        %v1009 = vshll.u32 %v1000, %v1007
        %v1010 = vshrl.u32 %v992, %v1008
        %v1011 = vor.u32 %v1009, %v1010
        %v1012 = vsub.s32 4294967266, %v1007
        %v1013 = vadd.s32 %v1012, 127
        %v1014 = vshll.u32 %v1013, 23
        %v1015 = vor.u32 4788187, %v1014
        %v1016 = vand.u32 2147483647, %v1015
        %v1018 = vcvt.s32.f32 %v1011
        %v1019 = vmul.f32 %v1018, %v1016
        %v1020 = vxor.u32 %v1019, 2147483648
        %v1021 = vsel %vm938, %v1020, %v1019
        %v1022 = vsub.s32 4, %v998
        %v1023 = vsel %vm938, %v1022, %v998
        %v1024 = vsel %vm937, %v832, %v1021
        %v1025 = vsel %vm937, 0, %v1023
        %v1026 = vcosq.f32.pop %v1024
        %v1027 = vsinq.f32.pop %v1024
        %vm1028 = vweird.f32 %v832
        %v1029 = vand.u32 %v1025, 3
        %vm1030 = vcmp.lt.s32.totalorder %v1029, 2
        %vm1031 = vcmp.eq.s32.totalorder %v1029, 0
        %v1032 = vxor.u32 %v1027, 2147483648
        %v1033 = vsel %vm1031, %v1026, %v1032
        %vm1034 = vcmp.eq.s32.totalorder %v1029, 2
        %v1035 = vxor.u32 %v1026, 2147483648
        %v1036 = vsel %vm1034, %v1035, %v1027
        %v1037 = vsel %vm1030, %v1033, %v1036
        %v1038 = vsel %vm1028, nan, %v1037
        %v1039 = vld [vmem:[#allocation5] sm:$0xff]
        %v1040 = vld [vmem:[#allocation5 + $0x8] sm:$0xff]
        %v1041 = vld [vmem:[#allocation5 + $0x10] sm:$0xff]
        %v1042 = vld [vmem:[#allocation5 + $0x18] sm:$0xff]
        %v1043 = vld [vmem:[#allocation5 + $0x20] sm:$0xff]
        %v1044 = vld [vmem:[#allocation5 + $0x28] sm:$0xff]
        %v1045 = vld [vmem:[#allocation5 + $0x30] sm:$0xff]
        %v1046 = vld [vmem:[#allocation5 + $0x38] sm:$0xff]
        %vm1047 = vcmask 261120
        %v1049 = vsel %vm1047, %v935, 0
        %v1052 = vsel %vm1047, %v1038, 0
        %1054 = vmatprep.subr.mxu0 0.0
        %1055 = vmatpush1.msra.mxu0 0.0
        %1056 = vmatprep.subr.mxu0 0.0
        %1057 = vmatpush1.msra.mxu0 0.0
        %1058 = vmatprep.subr.mxu0 0.0
        %1059 = vmatpush1.msra.mxu0 0.0
        %1060 = vmatprep.subr.mxu0 0.0
        %1061 = vmatpush1.msra.mxu0 0.0
        %1062 = vmatprep.subr.mxu0 0.0
        %1063 = vmatpush1.msra.mxu0 0.0
        %1064 = vmatprep.subr.mxu0 0.0
        %1065 = vmatpush1.msra.mxu0 0.0
        %1066 = vmatprep.subr.mxu0 0.0
        %1067 = vmatpush1.msra.mxu0 0.0
        %1068 = vmatprep.subr.mxu0 0.0
        %1069 = vmatpush1.msra.mxu0 0.0
        %1070 = vmatprep.subr.mxu0 0.0
        %1071 = vmatpush1.msra.mxu0 0.0
        %1072 = vmatprep.subr.mxu0 0.0
        %1073 = vmatpush1.msra.mxu0 0.0
        %1074 = vmatprep.subr.mxu0 0.0
        %1075 = vmatpush1.msra.mxu0 0.0
        %1076 = vmatprep.subr.mxu0 0.0
        %1077 = vmatpush1.msra.mxu0 0.0
        %1078 = vmatprep.subr.mxu0 %v1046
        %1079 = vmatpush1.msra.mxu0 %v1045
        %1080 = vmatprep.subr.mxu0 %v1044
        %1081 = vmatpush1.msra.mxu0 %v1043
        %1082 = vmatprep.subr.mxu0 %v1042
        %1083 = vmatpush1.msra.mxu0 %v1041
        %1084 = vmatprep.subr.mxu0 %v1040
        %1085 = vmatpush1.msra.mxu0 %v1039
        %1086 = vmatprep.subr.mxu0 0.0
        %1087 = vmatpush2.msra.mxu0 0.0
        %1088 = vmatprep.subr.mxu0 0.0
        %1089 = vmatpush2.msra.mxu0 0.0
        %1090 = vmatprep.subr.mxu0 0.0
        %1091 = vmatpush2.msra.mxu0 0.0
        %1092 = vmatprep.subr.mxu0 0.0
        %1093 = vmatpush2.msra.mxu0 0.0
        %1094 = vmatprep.subr.mxu0 0.0
        %1095 = vmatpush2.msra.mxu0 0.0
        %1096 = vmatprep.subr.mxu0 0.0
        %1097 = vmatpush2.msra.mxu0 0.0
        %1098 = vmatprep.subr.mxu0 0.0
        %1099 = vmatpush2.msra.mxu0 0.0
        %1100 = vmatprep.subr.mxu0 0.0
        %1101 = vmatpush2.msra.mxu0 0.0
        %1102 = vmatprep.subr.mxu0 0.0
        %1103 = vmatpush2.msra.mxu0 0.0
        %1104 = vmatprep.subr.mxu0 0.0
        %1105 = vmatpush2.msra.mxu0 0.0
        %1106 = vmatprep.subr.mxu0 0.0
        %1107 = vmatpush2.msra.mxu0 0.0
        %1108 = vmatprep.subr.mxu0 0.0
        %1109 = vmatpush2.msra.mxu0 0.0
        %1110 = vmatprep.subr.mxu0 0.0
        %1111 = vmatpush2.msra.mxu0 0.0
        %1112 = vmatprep.subr.mxu0 0.0
        %1113 = vmatpush2.msra.mxu0 0.0
        %1114 = vmatprep.subr.mxu0 0.0
        %1115 = vmatpush2.msra.mxu0 0.0
        %1116 = vmatprep.subr.mxu0 0.0
        %1117 = vmatpush2.msra.mxu0 0.0
        %1118 = vmatprep.mubr.f32.mxu0 0.0
        %1119 = vmatmul.mubr.f32.gmra.mxu0 %v1049
        %v1120 = vpop.f32.mrf.mxu0
        %v1121 = vadd.f32 0.0, %v1120
        %v1122 = vpop.f32.mrf.mxu0
        %v1123 = vadd.f32 0.0, %v1122
        %1124 = vmatprep.mubr.f32.mxu0 0.0
        %1125 = vmatmul.mubr.f32.gmra.mxu0 %v1052
        %v1126 = vpop.f32.mrf.mxu0
        %v1127 = vadd.f32 0.0, %v1126
        %v1128 = vpop.f32.mrf.mxu0
        %v1129 = vadd.f32 0.0, %v1128
        %1130 = vdwg.mxu0
        %v1131 = vld [vmem:[#allocation7] sm:$0x1]
        %v1132 = vlaneseq
        %v1133 = vshrl.u32 %v1132, 7
        %v1134 = vsub.s32 0, %v1133
        %v1135 = vrot.slane %v1131, %v1134
        %v1136 = vmul.f32 %v795, %v1135
        %v1137 = vmul.f32 %v800, %v1135
        %v1138 = vadd.f32 %v1121, %v1136
        %v1139 = vadd.f32 %v1127, %v1137
        %v1140 = vld [vmem:[#allocation8] sm:$0x1]
        %v1141 = vlaneseq
        %v1142 = vshrl.u32 %v1141, 7
        %v1143 = vsub.s32 0, %v1142
        %v1144 = vrot.slane %v1140, %v1143
        %v1145 = vadd.f32 %v1138, %v1144
        %v1146 = vadd.f32 %v1139, %v1144
        %v1147 = vld [vmem:[#allocation10] sm:$0x1]
        %v1148 = vld [vmem:[#allocation11] sm:$0x1]
        %1149 = vadd.xlane.f32.xlu0 %v1145
        %v1150 = vpop.xlane.xlu0 %1149
        %1151 = vadd.xlane.f32.xlu0 %v1146
        %v1152 = vpop.xlane.xlu0 %1151
        %v1153 = vrcp.pop 128.0
        %v1154 = vmul.f32 %v1150, %v1153
        %v1155 = vmul.f32 %v1152, %v1153
        %v1156 = vsub.f32 %v1145, %v1154
        %v1157 = vsub.f32 %v1146, %v1155
        %v1158 = vmul.f32 %v1156, %v1156
        %v1159 = vmul.f32 %v1157, %v1157
        %1160 = vadd.xlane.f32.xlu0 %v1158
        %v1161 = vpop.xlane.xlu0 %1160
        %1162 = vadd.xlane.f32.xlu0 %v1159
        %v1163 = vpop.xlane.xlu0 %1162
        %v1164 = vmul.f32 %v1161, %v1153
        %v1165 = vmul.f32 %v1163, %v1153
        %v1166 = vadd.f32 %v1164, 1e-05
        %v1167 = vadd.f32 %v1165, 1e-05
        %v1168 = vrsqrt.pop %v1166
        %v1169 = vrsqrt.pop %v1167
        %v1170 = vmul.f32 %v1156, %v1168
        %v1171 = vmul.f32 %v1157, %v1169
        %v1172 = vlaneseq
        %v1173 = vshrl.u32 %v1172, 7
        %v1174 = vsub.s32 0, %v1173
        %v1175 = vrot.slane %v1147, %v1174
        %v1176 = vmul.f32 %v1170, %v1175
        %v1177 = vmul.f32 %v1171, %v1175
        %v1178 = vlaneseq
        %v1179 = vshrl.u32 %v1178, 7
        %v1180 = vsub.s32 0, %v1179
        %v1181 = vrot.slane %v1148, %v1180
        %v1182 = vadd.f32 %v1176, %v1181
        %v1183 = vadd.f32 %v1177, %v1181
        %v1184 = vmax.f32 %v1182, 0.0
        %v1185 = vmax.f32 %v1183, 0.0
        %v1186 = vld [vmem:[#allocation7 + $0x1] sm:$0x1]
        %v1187 = vlaneseq
        %v1188 = vshrl.u32 %v1187, 7
        %v1189 = vsub.s32 0, %v1188
        %v1190 = vrot.slane %v1186, %v1189
        %v1191 = vmul.f32 %v819, %v1190
        %v1192 = vmul.f32 %v823, %v1190
        %v1193 = vadd.f32 %v1123, %v1191
        %v1194 = vadd.f32 %v1129, %v1192
        %v1195 = vld [vmem:[#allocation8 + $0x1] sm:$0x1]
        %v1196 = vlaneseq
        %v1197 = vshrl.u32 %v1196, 7
        %v1198 = vsub.s32 0, %v1197
        %v1199 = vrot.slane %v1195, %v1198
        %v1200 = vadd.f32 %v1193, %v1199
        %v1201 = vadd.f32 %v1194, %v1199
        %v1202 = vld [vmem:[#allocation10 + $0x1] sm:$0x1]
        %v1203 = vld [vmem:[#allocation11 + $0x1] sm:$0x1]
        %1204 = vadd.xlane.f32.xlu0 %v1200
        %v1205 = vpop.xlane.xlu0 %1204
        %1206 = vadd.xlane.f32.xlu0 %v1201
        %v1207 = vpop.xlane.xlu0 %1206
        %v1208 = vmul.f32 %v1205, %v1153
        %v1209 = vmul.f32 %v1207, %v1153
        %v1210 = vsub.f32 %v1200, %v1208
        %v1211 = vsub.f32 %v1201, %v1209
        %v1212 = vmul.f32 %v1210, %v1210
        %v1213 = vmul.f32 %v1211, %v1211
        %1214 = vadd.xlane.f32.xlu0 %v1212
        %v1215 = vpop.xlane.xlu0 %1214
        %1216 = vadd.xlane.f32.xlu0 %v1213
        %v1217 = vpop.xlane.xlu0 %1216
        %v1218 = vmul.f32 %v1215, %v1153
        %v1219 = vmul.f32 %v1217, %v1153
        %v1220 = vadd.f32 %v1218, 1e-05
        %v1221 = vadd.f32 %v1219, 1e-05
        %v1222 = vrsqrt.pop %v1220
        %v1223 = vrsqrt.pop %v1221
        %v1224 = vmul.f32 %v1210, %v1222
        %v1225 = vmul.f32 %v1211, %v1223
        %v1226 = vlaneseq
        %v1227 = vshrl.u32 %v1226, 7
        %v1228 = vsub.s32 0, %v1227
        %v1229 = vrot.slane %v1202, %v1228
        %v1230 = vmul.f32 %v1224, %v1229
        %v1231 = vmul.f32 %v1225, %v1229
        %v1232 = vlaneseq
        %v1233 = vshrl.u32 %v1232, 7
        %v1234 = vsub.s32 0, %v1233
        %v1235 = vrot.slane %v1203, %v1234
        %v1236 = vadd.f32 %v1230, %v1235
        %v1237 = vadd.f32 %v1231, %v1235
        %v1238 = vmax.f32 %v1236, 0.0
        %v1239 = vmax.f32 %v1237, 0.0
        %v1240 = vld [vmem:[#allocation13] sm:$0xff]
        %v1241 = vld [vmem:[#allocation13 + $0x8] sm:$0xff]
        %v1242 = vld [vmem:[#allocation13 + $0x10] sm:$0xff]
        %v1243 = vld [vmem:[#allocation13 + $0x18] sm:$0xff]
        %v1244 = vld [vmem:[#allocation13 + $0x20] sm:$0xff]
        %v1245 = vld [vmem:[#allocation13 + $0x28] sm:$0xff]
        %v1246 = vld [vmem:[#allocation13 + $0x30] sm:$0xff]
        %v1247 = vld [vmem:[#allocation13 + $0x38] sm:$0xff]
        %v1248 = vld [vmem:[#allocation13 + $0x40] sm:$0xff]
        %v1249 = vld [vmem:[#allocation13 + $0x48] sm:$0xff]
        %v1250 = vld [vmem:[#allocation13 + $0x50] sm:$0xff]
        %v1251 = vld [vmem:[#allocation13 + $0x58] sm:$0xff]
        %v1252 = vld [vmem:[#allocation13 + $0x60] sm:$0xff]
        %v1253 = vld [vmem:[#allocation13 + $0x68] sm:$0xff]
        %v1254 = vld [vmem:[#allocation13 + $0x70] sm:$0xff]
        %v1255 = vld [vmem:[#allocation13 + $0x78] sm:$0xff]
        %v1256 = vld [vmem:[#allocation13 + $0x80] sm:$0xff]
        %v1257 = vld [vmem:[#allocation13 + $0x88] sm:$0xff]
        %v1258 = vld [vmem:[#allocation13 + $0x90] sm:$0xff]
        %v1259 = vld [vmem:[#allocation13 + $0x98] sm:$0xff]
        %v1260 = vld [vmem:[#allocation13 + $0xa0] sm:$0xff]
        %v1261 = vld [vmem:[#allocation13 + $0xa8] sm:$0xff]
        %v1262 = vld [vmem:[#allocation13 + $0xb0] sm:$0xff]
        %v1263 = vld [vmem:[#allocation13 + $0xb8] sm:$0xff]
        %v1264 = vld [vmem:[#allocation13 + $0xc0] sm:$0xff]
        %v1265 = vld [vmem:[#allocation13 + $0xc8] sm:$0xff]
        %v1266 = vld [vmem:[#allocation13 + $0xd0] sm:$0xff]
        %v1267 = vld [vmem:[#allocation13 + $0xd8] sm:$0xff]
        %v1268 = vld [vmem:[#allocation13 + $0xe0] sm:$0xff]
        %v1269 = vld [vmem:[#allocation13 + $0xe8] sm:$0xff]
        %v1270 = vld [vmem:[#allocation13 + $0xf0] sm:$0xff]
        %v1271 = vld [vmem:[#allocation13 + $0xf8] sm:$0xff]
        %v1272 = vld [vmem:[#allocation14] sm:$0x1]
        %v1274 = vlaneseq
        %v1275 = vshrl.u32 %v1274, 7
        %v1276 = vsub.s32 0, %v1275
        %v1277 = vrot.slane %v1272, %v1276
        %1279 = vmatprep.subr.mxu0 0.0
        %1280 = vmatpush1.msra.mxu0 %v1255
        %1281 = vmatprep.subr.mxu0 0.0
        %1282 = vmatpush1.msra.mxu0 %v1254
        %1283 = vmatprep.subr.mxu0 0.0
        %1284 = vmatpush1.msra.mxu0 %v1253
        %1285 = vmatprep.subr.mxu0 0.0
        %1286 = vmatpush1.msra.mxu0 %v1252
        %1287 = vmatprep.subr.mxu0 0.0
        %1288 = vmatpush1.msra.mxu0 %v1251
        %1289 = vmatprep.subr.mxu0 0.0
        %1290 = vmatpush1.msra.mxu0 %v1250
        %1291 = vmatprep.subr.mxu0 0.0
        %1292 = vmatpush1.msra.mxu0 %v1249
        %1293 = vmatprep.subr.mxu0 0.0
        %1294 = vmatpush1.msra.mxu0 %v1248
        %1295 = vmatprep.subr.mxu0 0.0
        %1296 = vmatpush1.msra.mxu0 %v1247
        %1297 = vmatprep.subr.mxu0 0.0
        %1298 = vmatpush1.msra.mxu0 %v1246
        %1299 = vmatprep.subr.mxu0 0.0
        %1300 = vmatpush1.msra.mxu0 %v1245
        %1301 = vmatprep.subr.mxu0 0.0
        %1302 = vmatpush1.msra.mxu0 %v1244
        %1303 = vmatprep.subr.mxu0 0.0
        %1304 = vmatpush1.msra.mxu0 %v1243
        %1305 = vmatprep.subr.mxu0 0.0
        %1306 = vmatpush1.msra.mxu0 %v1242
        %1307 = vmatprep.subr.mxu0 0.0
        %1308 = vmatpush1.msra.mxu0 %v1241
        %1309 = vmatprep.subr.mxu0 0.0
        %1310 = vmatpush1.msra.mxu0 %v1240
        %1311 = vmatprep.subr.mxu0 0.0
        %1312 = vmatpush2.msra.mxu0 %v1271
        %1313 = vmatprep.subr.mxu0 0.0
        %1314 = vmatpush2.msra.mxu0 %v1270
        %1315 = vmatprep.subr.mxu0 0.0
        %1316 = vmatpush2.msra.mxu0 %v1269
        %1317 = vmatprep.subr.mxu0 0.0
        %1318 = vmatpush2.msra.mxu0 %v1268
        %1319 = vmatprep.subr.mxu0 0.0
        %1320 = vmatpush2.msra.mxu0 %v1267
        %1321 = vmatprep.subr.mxu0 0.0
        %1322 = vmatpush2.msra.mxu0 %v1266
        %1323 = vmatprep.subr.mxu0 0.0
        %1324 = vmatpush2.msra.mxu0 %v1265
        %1325 = vmatprep.subr.mxu0 0.0
        %1326 = vmatpush2.msra.mxu0 %v1264
        %1327 = vmatprep.subr.mxu0 0.0
        %1328 = vmatpush2.msra.mxu0 %v1263
        %1329 = vmatprep.subr.mxu0 0.0
        %1330 = vmatpush2.msra.mxu0 %v1262
        %1331 = vmatprep.subr.mxu0 0.0
        %1332 = vmatpush2.msra.mxu0 %v1261
        %1333 = vmatprep.subr.mxu0 0.0
        %1334 = vmatpush2.msra.mxu0 %v1260
        %1335 = vmatprep.subr.mxu0 0.0
        %1336 = vmatpush2.msra.mxu0 %v1259
        %1337 = vmatprep.subr.mxu0 0.0
        %1338 = vmatpush2.msra.mxu0 %v1258
        %1339 = vmatprep.subr.mxu0 0.0
        %1340 = vmatpush2.msra.mxu0 %v1257
        %1341 = vmatprep.subr.mxu0 0.0
        %1342 = vmatpush2.msra.mxu0 %v1256
        %1343 = vmatprep.mubr.f32.mxu0 %v1238
        %1344 = vmatmul.mubr.f32.gmra.mxu0 %v1184
        %v1345 = vpop.f32.mrf.mxu0
        %v1346 = vadd.f32 %v1277, %v1345
        %v1347 = vpop.f32.mrf.mxu0
        %1348 = vmatprep.mubr.f32.mxu0 %v1239
        %1349 = vmatmul.mubr.f32.gmra.mxu0 %v1185
        %v1350 = vpop.f32.mrf.mxu0
        %v1351 = vadd.f32 %v1277, %v1350
        %v1352 = vpop.f32.mrf.mxu0
        %1353 = vdwg.mxu0
        %v1354 = vld [vmem:[%s763] sm:$0xff]
        %v1355 = vld [vmem:[%s763 + $0x8] sm:$0xff]
        %v1356 = vadd.f32 %v1346, %v1354
        %v1357 = vadd.f32 %v1351, %v1355
        %v1358 = vld [vmem:[%s777] sm:$0xff]
        %v1359 = vld [vmem:[%s777 + $0x8] sm:$0xff]
        %v1360 = vadd.f32 %v1356, %v1358
        %v1361 = vadd.f32 %v1357, %v1359
        %v1362 = vld [vmem:[#allocation16] sm:$0x1]
        %v1363 = vld [vmem:[#allocation17] sm:$0x1]
        %1364 = vadd.xlane.f32.xlu0 %v1360
        %v1365 = vpop.xlane.xlu0 %1364
        %1366 = vadd.xlane.f32.xlu0 %v1361
        %v1367 = vpop.xlane.xlu0 %1366
        %v1368 = vmul.f32 %v1365, %v1153
        %v1369 = vmul.f32 %v1367, %v1153
        %v1370 = vsub.f32 %v1360, %v1368
        %v1371 = vsub.f32 %v1361, %v1369
        %v1372 = vmul.f32 %v1370, %v1370
        %v1373 = vmul.f32 %v1371, %v1371
        %1374 = vadd.xlane.f32.xlu0 %v1372
        %v1375 = vpop.xlane.xlu0 %1374
        %1376 = vadd.xlane.f32.xlu0 %v1373
        %v1377 = vpop.xlane.xlu0 %1376
        %v1378 = vmul.f32 %v1375, %v1153
        %v1379 = vmul.f32 %v1377, %v1153
        %v1380 = vadd.f32 %v1378, 1e-05
        %v1381 = vadd.f32 %v1379, 1e-05
        %v1382 = vrsqrt.pop %v1380
        %v1383 = vrsqrt.pop %v1381
        %v1384 = vmul.f32 %v1370, %v1382
        %v1385 = vmul.f32 %v1371, %v1383
        %v1387 = vlaneseq
        %v1388 = vshrl.u32 %v1387, 7
        %v1389 = vsub.s32 0, %v1388
        %v1390 = vrot.slane %v1362, %v1389
        %v1392 = vmul.f32 %v1384, %v1390
        %v1393 = vmul.f32 %v1385, %v1390
        %v1395 = vlaneseq
        %v1396 = vshrl.u32 %v1395, 7
        %v1397 = vsub.s32 0, %v1396
        %v1398 = vrot.slane %v1363, %v1397
        %v1400 = vadd.f32 %v1392, %v1398
        %v1401 = vadd.f32 %v1393, %v1398
        %v1402 = vmax.f32 %v1400, 0.0
        %v1403 = vmax.f32 %v1401, 0.0
        %v1404 = vld [vmem:[#allocation19] sm:$0xff]
        %v1405 = vld [vmem:[#allocation19 + $0x8] sm:$0xff]
        %v1406 = vld [vmem:[#allocation19 + $0x10] sm:$0xff]
        %v1407 = vld [vmem:[#allocation19 + $0x18] sm:$0xff]
        %v1408 = vld [vmem:[#allocation19 + $0x20] sm:$0xff]
        %v1409 = vld [vmem:[#allocation19 + $0x28] sm:$0xff]
        %v1410 = vld [vmem:[#allocation19 + $0x30] sm:$0xff]
        %v1411 = vld [vmem:[#allocation19 + $0x38] sm:$0xff]
        %v1412 = vld [vmem:[#allocation19 + $0x40] sm:$0xff]
        %v1413 = vld [vmem:[#allocation19 + $0x48] sm:$0xff]
        %v1414 = vld [vmem:[#allocation19 + $0x50] sm:$0xff]
        %v1415 = vld [vmem:[#allocation19 + $0x58] sm:$0xff]
        %v1416 = vld [vmem:[#allocation19 + $0x60] sm:$0xff]
        %v1417 = vld [vmem:[#allocation19 + $0x68] sm:$0xff]
        %v1418 = vld [vmem:[#allocation19 + $0x70] sm:$0xff]
        %v1419 = vld [vmem:[#allocation19 + $0x78] sm:$0xff]
        %v1420 = vld [vmem:[#allocation20] sm:$0x1]
        %v1422 = vlaneseq
        %v1423 = vshrl.u32 %v1422, 7
        %v1424 = vsub.s32 0, %v1423
        %v1425 = vrot.slane %v1420, %v1424
        %1427 = vmatprep.subr.mxu0 0.0
        %1428 = vmatpush1.msra.mxu0 %v1419
        %1429 = vmatprep.subr.mxu0 0.0
        %1430 = vmatpush1.msra.mxu0 %v1418
        %1431 = vmatprep.subr.mxu0 0.0
        %1432 = vmatpush1.msra.mxu0 %v1417
        %1433 = vmatprep.subr.mxu0 0.0
        %1434 = vmatpush1.msra.mxu0 %v1416
        %1435 = vmatprep.subr.mxu0 0.0
        %1436 = vmatpush1.msra.mxu0 %v1415
        %1437 = vmatprep.subr.mxu0 0.0
        %1438 = vmatpush1.msra.mxu0 %v1414
        %1439 = vmatprep.subr.mxu0 0.0
        %1440 = vmatpush1.msra.mxu0 %v1413
        %1441 = vmatprep.subr.mxu0 0.0
        %1442 = vmatpush1.msra.mxu0 %v1412
        %1443 = vmatprep.subr.mxu0 0.0
        %1444 = vmatpush1.msra.mxu0 %v1411
        %1445 = vmatprep.subr.mxu0 0.0
        %1446 = vmatpush1.msra.mxu0 %v1410
        %1447 = vmatprep.subr.mxu0 0.0
        %1448 = vmatpush1.msra.mxu0 %v1409
        %1449 = vmatprep.subr.mxu0 0.0
        %1450 = vmatpush1.msra.mxu0 %v1408
        %1451 = vmatprep.subr.mxu0 0.0
        %1452 = vmatpush1.msra.mxu0 %v1407
        %1453 = vmatprep.subr.mxu0 0.0
        %1454 = vmatpush1.msra.mxu0 %v1406
        %1455 = vmatprep.subr.mxu0 0.0
        %1456 = vmatpush1.msra.mxu0 %v1405
        %1457 = vmatprep.subr.mxu0 0.0
        %1458 = vmatpush1.msra.mxu0 %v1404
        %1459 = vmatprep.subr.mxu0 0.0
        %1460 = vmatpush2.msra.mxu0 0.0
        %1461 = vmatprep.subr.mxu0 0.0
        %1462 = vmatpush2.msra.mxu0 0.0
        %1463 = vmatprep.subr.mxu0 0.0
        %1464 = vmatpush2.msra.mxu0 0.0
        %1465 = vmatprep.subr.mxu0 0.0
        %1466 = vmatpush2.msra.mxu0 0.0
        %1467 = vmatprep.subr.mxu0 0.0
        %1468 = vmatpush2.msra.mxu0 0.0
        %1469 = vmatprep.subr.mxu0 0.0
        %1470 = vmatpush2.msra.mxu0 0.0
        %1471 = vmatprep.subr.mxu0 0.0
        %1472 = vmatpush2.msra.mxu0 0.0
        %1473 = vmatprep.subr.mxu0 0.0
        %1474 = vmatpush2.msra.mxu0 0.0
        %1475 = vmatprep.subr.mxu0 0.0
        %1476 = vmatpush2.msra.mxu0 0.0
        %1477 = vmatprep.subr.mxu0 0.0
        %1478 = vmatpush2.msra.mxu0 0.0
        %1479 = vmatprep.subr.mxu0 0.0
        %1480 = vmatpush2.msra.mxu0 0.0
        %1481 = vmatprep.subr.mxu0 0.0
        %1482 = vmatpush2.msra.mxu0 0.0
        %1483 = vmatprep.subr.mxu0 0.0
        %1484 = vmatpush2.msra.mxu0 0.0
        %1485 = vmatprep.subr.mxu0 0.0
        %1486 = vmatpush2.msra.mxu0 0.0
        %1487 = vmatprep.subr.mxu0 0.0
        %1488 = vmatpush2.msra.mxu0 0.0
        %1489 = vmatprep.subr.mxu0 0.0
        %1490 = vmatpush2.msra.mxu0 0.0
        %1491 = vmatprep.mubr.f32.mxu0 0.0
        %1492 = vmatmul.mubr.f32.gmra.mxu0 %v1402
        %v1493 = vpop.f32.mrf.mxu0
        %v1494 = vadd.f32 %v1425, %v1493
        %v1495 = vpop.f32.mrf.mxu0
        %1496 = vmatprep.mubr.f32.mxu0 0.0
        %1497 = vmatmul.mubr.f32.gmra.mxu0 %v1403
        %v1498 = vpop.f32.mrf.mxu0
        %v1499 = vadd.f32 %v1425, %v1498
        %v1500 = vpop.f32.mrf.mxu0
        %1501 = vdwg.mxu0
        %1502 = vst [vmem:[%s740] sm:$0xff] %v1494
        %1503 = vst [vmem:[%s740 + $0x8] sm:$0xff] %v1499
        %s1504 = sand.u32 %s396, 1
        %s1505 = scalar_lea.sflag [#allocation4], %s1504
        %s1506 = sand.u32 %s396, 1
        %s1507 = smul.addr %s1506, 16
        %s1508 = scalar_lea.vmem [#allocation22], %s1507
        // Predicated region
        $region133: #{tpu_custom_call.1} parent=83 // pred_check
          %p1509 = pneg %p406
        $region134: #{tpu_custom_call.1} parent=83 // pred_check_branch
          %1511 = sbr.rel (%p1509) target = $region136
        $region135: #{tpu_custom_call.1} parent=83 // pred_region
          %s1512 = smul.u32 2, %s37
          %s1513 = ssub.s32 3, %s1512
          %p1514 = scmp.lt.s32.totalorder %s1513, 2
          %s1515 = scalar_select %p1514, %s1513, 2
          %s1516 = smul.u32 128, %s1515
          %s1518 = ssub.s32 256, %s1516
          %1519 = vsyncadd %s1505, %s1518
          %p1520 = scmp.ne.s32.totalorder 0, %s1516
          %s1521 = smul.addr %s1512, 128
          %s1522 = scalar_lea.hbm %s16, %s1521
          %s1523 = smul.u32 8, %s1515
          %s1524 = sshll.u32 %s1508, 4
          %s1525 = int_to_ptr.vmem [resolvable:$true] %s1524
          %s1526 = sshll.u32 %s1523, 4
          %1530 = dma.vmem_to_hbm [thread:$0]  (%p1520), %s1525, %s1526, %s1522, %s1505, 128, 128, 8
        $region136: #{tpu_custom_call.1} parent=83 // pred_fallthru
          _
      $region84: #{tpu_custom_call.1} parent=5 // pred_fallthru
        _
      %p1531 = scmp.le.s32.totalorder 2, %s32
      // Predicated region
      $region137: #{tpu_custom_call.1} parent=5 // pred_check
        %p1532 = pneg %p1531
      $region138: #{tpu_custom_call.1} parent=5 // pred_check_branch
        %1534 = sbr.rel (%p1532) target = $region140
      $region139: #{tpu_custom_call.1} parent=5 // pred_region
        %s1535 = ssub.s32 %s32, 2
        // Predicated region
        $region141: #{tpu_custom_call.1} parent=139 // pred_check
          %p1536 = pneg %p412
        $region142: #{tpu_custom_call.1} parent=139 // pred_check_branch
          %1538 = sbr.rel (%p1536) target = $region144
        $region143: #{tpu_custom_call.1} parent=139 // pred_region
          %s1539 = sand.u32 %s397, 1
          %s1540 = scalar_lea.sflag [#allocation4], %s1539
          %s1541 = sand.u32 %s397, 1
          %s1542 = smul.addr %s1541, 16
          %s1543 = scalar_lea.vmem [#allocation22], %s1542
          %1544 = dma.done %s1540, 256
        $region144: #{tpu_custom_call.1} parent=139 // pred_fallthru
          _
      $region140: #{tpu_custom_call.1} parent=5 // pred_fallthru
        _
    $region6: #{tpu_custom_call.1} parent=1 // loop_footer
      %s36 = sadd.s32 1, %s32
    $region7: #{tpu_custom_call.1} parent=1 // loop_footer_branch
      %31 = sbr.rel target = $region3
    $region8: #{tpu_custom_call.1} parent=1 // loop_exit
      _
    %1545 = vsyncpa [#allocation3], 1
    %s1546 = scalar_lea.sflag [#allocation3], 1
    %1547 = vsyncpa %s1546, 1
    %1548 = vsyncpa [#allocation6], 1
    %1549 = vsyncpa [#allocation9], 1
    %1550 = vsyncpa [#allocation12], 1
    %1551 = vsyncpa [#allocation15], 1
    %1552 = vsyncpa [#allocation18], 1
    %1553 = vsyncpa [#allocation21], 1
    %1554 = vsyncpa [#allocation4], 1
    %s1555 = scalar_lea.sflag [#allocation4], 1
    %1556 = vsyncpa %s1555, 1

</llo_original>
